<compile_context>
chip_gen: v7x
topology: tpu7x:2x2x1
jax: 0.10.0
libtpu: 0.0.40
codegen_flags: <defaults>
</compile_context>

<pallas_src>
import functools

import jax
import jax.numpy as jnp
from jax.experimental import pallas as pl
from jax.experimental.pallas import tpu as pltpu

BATCH_TILE = 1024           # max rows per grid step (amortizes ~0.35us/step)
RECON_DTYPE = jnp.bfloat16  # halved writeback; flip to jnp.float32 if a
                            # downstream consumer strictly needs f32 from HBM.


def _round_up(n, m):
    return ((n + m - 1) // m) * m


def _cdiv(a, b):
    return (a + b - 1) // b


# ----------------------------------------------------------------------------
# Kernel
# ----------------------------------------------------------------------------
def vae_forward_kernel(
    x_ref, eps_ref,
    w1_ref, b1_ref,
    w2_ref, b2_ref,
    w3_ref, b3_ref,     # fused, z-padded fc31|fc32: (h2, 2*z_pad), (1, 2*z_pad)
    w4_ref, b4_ref,
    w5_ref, b5_ref,
    w6_ref, b6_ref,
    recon_ref, muvar_ref,
):
    z_pad = eps_ref.shape[-1]
    x = x_ref[...]          # (TB, x_dim)  bf16 straight from HBM
    eps = eps_ref[...]      # (TB, z_pad)  f32

    def linear(h_bf16, w_ref, b_ref):
        # bf16 MXU matmul with f32 accumulation; bias add / activations in f32.
        return (jnp.dot(h_bf16, w_ref[...], preferred_element_type=jnp.float32)
                + b_ref[...])

    # ---- encoder ----
    h = jnp.maximum(linear(x, w1_ref, b1_ref), 0.0)                    # relu(fc1)
    h = jnp.maximum(linear(h.astype(jnp.bfloat16), w2_ref, b2_ref), 0.0)  # relu(fc2)
    muvar = linear(h.astype(jnp.bfloat16), w3_ref, b3_ref)             # fc31|fc32
    mu = muvar[:, :z_pad]
    log_var = muvar[:, z_pad:]

    # ---- reparameterization: z = eps * exp(0.5*log_var) + mu ----
    # Padded log_var/mu/eps columns are 0, so padded z columns stay 0.
    z = eps * jnp.exp(0.5 * log_var) + mu

    # ---- decoder ----
    d = jnp.maximum(linear(z.astype(jnp.bfloat16), w4_ref, b4_ref), 0.0)  # relu(fc4)
    d = jnp.maximum(linear(d.astype(jnp.bfloat16), w5_ref, b5_ref), 0.0)  # relu(fc5)
    recon = jax.nn.sigmoid(linear(d.astype(jnp.bfloat16), w6_ref, b6_ref))  # sigmoid(fc6)

    recon_ref[...] = recon.astype(recon_ref.dtype)   # bf16 writeback
    muvar_ref[...] = muvar                           # f32, lane-dense (2*z_pad)


# ----------------------------------------------------------------------------
# Parameter preparation (done once, outside the hot path)
# ----------------------------------------------------------------------------
def prepare_vae_params(params, z_dim):
    """params: dict name -> (w [in,out] f32, b [1,out] f32).

    Returns a flat tuple (w1,b1,...,w6,b6) with:
      * fc31/fc32 fused along the output axis, each half zero-padded to
        z_pad = round_up(z_dim, 64) lanes (lane-dense muvar store),
      * fc4 input rows zero-padded to z_pad,
      * weights cast to bf16, biases kept f32.
    No x_dim padding: w1 keeps 784 input rows, w6/b6 keep 784 output cols.
    """
    z_pad = _round_up(z_dim, 64)
    pz = z_pad - z_dim

    w1, b1 = params["fc1"]
    w2, b2 = params["fc2"]
    w31, b31 = params["fc31"]
    w32, b32 = params["fc32"]
    w4, b4 = params["fc4"]
    w5, b5 = params["fc5"]
    w6, b6 = params["fc6"]

    w3 = jnp.concatenate([jnp.pad(w31, ((0, 0), (0, pz))),
                          jnp.pad(w32, ((0, 0), (0, pz)))], axis=1)   # (h2, 2*z_pad)
    b3 = jnp.concatenate([jnp.pad(b31, ((0, 0), (0, pz))),
                          jnp.pad(b32, ((0, 0), (0, pz)))], axis=1)   # (1, 2*z_pad)
    w4p = jnp.pad(w4, ((0, pz), (0, 0)))                              # zero input rows

    flat = []
    for w, b in ((w1, b1), (w2, b2), (w3, b3), (w4p, b4), (w5, b5), (w6, b6)):
        flat.append(w.astype(jnp.bfloat16))   # bf16 weights (MXU operands)
        flat.append(b.astype(jnp.float32))    # f32 biases
    return tuple(flat)


# ----------------------------------------------------------------------------
# Wrapper
# ----------------------------------------------------------------------------
@functools.partial(jax.jit, static_argnames=("x_dim",))
def vae_forward(x, eps, prepped_params, *, x_dim):
    # mirrors x.view(-1, 784); bf16 here halves the x DMA stream.
    x2d = x.reshape(-1, x_dim).astype(jnp.bfloat16)
    batch = x2d.shape[0]
    z_dim = eps.shape[-1]
    z_pad = _round_up(z_dim, 64)

    # Adaptive batch tile (multiple of 8 rows).  Prefer >=2 grid steps so the
    # "parallel" batch axis can span both TensorCores on v7x.
    tb = min(BATCH_TILE, _round_up(batch, 8))
    if _round_up(batch, tb) // tb < 2:
        half = _round_up(_cdiv(batch, 2), 8)
        if 8 <= half < tb:
            tb = half
    b_pad = _round_up(batch, tb)
    n_tiles = b_pad // tb

    # No x_dim padding; only pad batch rows when batch % tb != 0.
    if b_pad != batch:
        x2d = jnp.pad(x2d, ((0, b_pad - batch), (0, 0)))
    eps_p = eps.astype(jnp.float32)
    if z_pad != z_dim:
        eps_p = jnp.pad(eps_p, ((0, 0), (0, z_pad - z_dim)))
    if b_pad != batch:
        eps_p = jnp.pad(eps_p, ((0, b_pad - batch), (0, 0)))

    def tile_spec(feat):
        # activation / output tiles stream over the batch grid axis
        return pl.BlockSpec((tb, feat), lambda i: (i, 0))

    def resident_spec(shape):
        # weights & biases: same block every step -> DMA'd once, stay in VMEM.
        # (default double-buffering of these costs <0.5 MiB; left as-is)
        return pl.BlockSpec(shape, lambda i: (0, 0))

    in_specs = [tile_spec(x_dim), tile_spec(z_pad)]
    in_specs += [resident_spec(a.shape) for a in prepped_params]

    out_shapes = (
        jax.ShapeDtypeStruct((b_pad, x_dim), RECON_DTYPE),       # recon
        jax.ShapeDtypeStruct((b_pad, 2 * z_pad), jnp.float32),   # mu | log_var
    )
    out_specs = (tile_spec(x_dim), tile_spec(2 * z_pad))

    recon_p, muvar_p = pl.pallas_call(
        vae_forward_kernel,
        grid=(n_tiles,),
        out_shape=out_shapes,
        in_specs=in_specs,
        out_specs=out_specs,
        compiler_params=pltpu.CompilerParams(
            dimension_semantics=("parallel",),
        ),
    )(x2d, eps_p, *prepped_params)

    recon = recon_p if b_pad == batch else recon_p[:batch]
    mu = muvar_p[:batch, :z_dim]
    log_var = muvar_p[:batch, z_pad:z_pad + z_dim]
    return recon, mu, log_var


# ----------------------------------------------------------------------------
# Deterministic parameter init (PyTorch nn.Linear default: U(-1/sqrt(fan_in),..))
# ----------------------------------------------------------------------------
def init_linear(key, in_features, out_features):
    kw, kb = jax.random.split(key)
    bound = 1.0 / jnp.sqrt(in_features)
    # stored as [in, out] (transposed vs. PyTorch) so the kernel does x @ W
    w = jax.random.uniform(kw, (in_features, out_features), jnp.float32, -bound, bound)
    b = jax.random.uniform(kb, (1, out_features), jnp.float32, -bound, bound)
    return w, b


def init_vae_params(key, x_dim, h1, h2, z_dim):
    names_dims = [
        ("fc1", x_dim, h1),
        ("fc2", h1, h2),
        ("fc31", h2, z_dim),
        ("fc32", h2, z_dim),
        ("fc4", z_dim, h2),
        ("fc5", h2, h1),
        ("fc6", h1, x_dim),
    ]
    keys = jax.random.split(key, len(names_dims))
    return {name: init_linear(k, fi, fo) for k, (name, fi, fo) in zip(keys, names_dims)}


# ----------------------------------------------------------------------------
# Pure-JAX reference (f32) for a correctness sanity check
# ----------------------------------------------------------------------------
def vae_forward_ref(x, eps, params, x_dim):
    x2d = x.reshape(-1, x_dim).astype(jnp.float32)

    def lin(h, name):
        w, b = params[name]
        return h @ w + b

    h = jax.nn.relu(lin(x2d, "fc1"))
    h = jax.nn.relu(lin(h, "fc2"))
    mu = lin(h, "fc31")
    log_var = lin(h, "fc32")
    z = eps * jnp.exp(0.5 * log_var) + mu
    d = jax.nn.relu(lin(z, "fc4"))
    d = jax.nn.relu(lin(d, "fc5"))
    recon = jax.nn.sigmoid(lin(d, "fc6"))
    return recon, mu, log_var


# ----------------------------------------------------------------------------
if __name__ == "__main__":
    # The module hard-codes view(-1, 784), so x_dim=784; small hidden/batch.
    X_DIM, H1, H2, Z_DIM = 784, 128, 64, 32
    BATCH = 8

    root = jax.random.PRNGKey(0)
    k_params, k_x, k_eps = jax.random.split(root, 3)

    params = init_vae_params(k_params, X_DIM, H1, H2, Z_DIM)
    prepped = prepare_vae_params(params, Z_DIM)

    # x shaped like MNIST images (batch, 1, 28, 28) -> view(-1, 784)
    x = jax.random.normal(k_x, (BATCH, 1, 28, 28), jnp.float32)
    # eps for the reparameterization trick (torch.randn_like(std)) is drawn
    # deterministically outside the kernel and passed in.
    eps = jax.random.normal(k_eps, (BATCH, Z_DIM), jnp.float32)

    recon, mu, log_var = vae_forward(x, eps, prepped, x_dim=X_DIM)
    jax.block_until_ready((recon, mu, log_var))

    # sanity check vs pure-JAX f32 reference (bf16 MXU + bf16 recon -> loose tol)
    r_ref, mu_ref_v, lv_ref = vae_forward_ref(x, eps, params, X_DIM)
    assert recon.shape == (BATCH, X_DIM) and mu.shape == (BATCH, Z_DIM)
    assert log_var.shape == (BATCH, Z_DIM)
    assert jnp.allclose(recon.astype(jnp.float32), r_ref, atol=5e-2, rtol=5e-2), "recon mismatch"
    assert jnp.allclose(mu, mu_ref_v, atol=5e-2, rtol=5e-2), "mu mismatch"
    assert jnp.allclose(log_var, lv_ref, atol=5e-2, rtol=5e-2), "log_var mismatch"

    print("KERNEL_OK")
</pallas_src>

<mosaic_0001>
module attributes {stable_mosaic.version = 11 : i64} {
  func.func @vae_forward_kernel(%arg0: i32, %arg1: memref<8x784xbf16, #tpu.memory_space<vmem>>, %arg2: memref<8x64xf32, #tpu.memory_space<vmem>>, %arg3: memref<784x128xbf16, #tpu.memory_space<vmem>>, %arg4: memref<1x128xf32, #tpu.memory_space<vmem>>, %arg5: memref<128x64xbf16, #tpu.memory_space<vmem>>, %arg6: memref<1x64xf32, #tpu.memory_space<vmem>>, %arg7: memref<64x128xbf16, #tpu.memory_space<vmem>>, %arg8: memref<1x128xf32, #tpu.memory_space<vmem>>, %arg9: memref<64x64xbf16, #tpu.memory_space<vmem>>, %arg10: memref<1x64xf32, #tpu.memory_space<vmem>>, %arg11: memref<64x128xbf16, #tpu.memory_space<vmem>>, %arg12: memref<1x128xf32, #tpu.memory_space<vmem>>, %arg13: memref<128x784xbf16, #tpu.memory_space<vmem>>, %arg14: memref<1x784xf32, #tpu.memory_space<vmem>>, %arg15: memref<8x784xbf16, #tpu.memory_space<vmem>>, %arg16: memref<8x128xf32, #tpu.memory_space<vmem>>) attributes {dimension_semantics = [#tpu.dimension_semantics<parallel>], iteration_bounds = array<i64: 1>, scalar_prefetch = 0 : i64, scratch_operands = 0 : i64, tpu.core_type = #tpu.core_type<tc>, window_params = [{transform_indices = @transform_0, window_bounds = array<i64: 8, 784>}, {transform_indices = @transform_1, window_bounds = array<i64: 8, 64>}, {pipeline_mode = #tpu.pipeline_mode<synchronous>, transform_indices = @transform_2, window_bounds = array<i64: 784, 128>}, {pipeline_mode = #tpu.pipeline_mode<synchronous>, transform_indices = @transform_3, window_bounds = array<i64: 1, 128>}, {pipeline_mode = #tpu.pipeline_mode<synchronous>, transform_indices = @transform_4, window_bounds = array<i64: 128, 64>}, {pipeline_mode = #tpu.pipeline_mode<synchronous>, transform_indices = @transform_5, window_bounds = array<i64: 1, 64>}, {pipeline_mode = #tpu.pipeline_mode<synchronous>, transform_indices = @transform_6, window_bounds = array<i64: 64, 128>}, {pipeline_mode = #tpu.pipeline_mode<synchronous>, transform_indices = @transform_7, window_bounds = array<i64: 1, 128>}, {pipeline_mode = #tpu.pipeline_mode<synchronous>, transform_indices = @transform_8, window_bounds = array<i64: 64, 64>}, {pipeline_mode = #tpu.pipeline_mode<synchronous>, transform_indices = @transform_9, window_bounds = array<i64: 1, 64>}, {pipeline_mode = #tpu.pipeline_mode<synchronous>, transform_indices = @transform_10, window_bounds = array<i64: 64, 128>}, {pipeline_mode = #tpu.pipeline_mode<synchronous>, transform_indices = @transform_11, window_bounds = array<i64: 1, 128>}, {pipeline_mode = #tpu.pipeline_mode<synchronous>, transform_indices = @transform_12, window_bounds = array<i64: 128, 784>}, {pipeline_mode = #tpu.pipeline_mode<synchronous>, transform_indices = @transform_13, window_bounds = array<i64: 1, 784>}, {transform_indices = @transform_14, window_bounds = array<i64: 8, 784>}, {transform_indices = @transform_15, window_bounds = array<i64: 8, 128>}]} {
    %c0 = arith.constant 0 : index
    %c0_0 = arith.constant 0 : index
    %0 = vector.load %arg1[%c0, %c0_0] : memref<8x784xbf16, #tpu.memory_space<vmem>>, vector<8x784xbf16>
    %c0_1 = arith.constant 0 : index
    %c0_2 = arith.constant 0 : index
    %1 = vector.load %arg2[%c0_1, %c0_2] : memref<8x64xf32, #tpu.memory_space<vmem>>, vector<8x64xf32>
    %c0_3 = arith.constant 0 : index
    %c0_4 = arith.constant 0 : index
    %2 = vector.load %arg3[%c0_3, %c0_4] : memref<784x128xbf16, #tpu.memory_space<vmem>>, vector<784x128xbf16>
    %cst = arith.constant dense<0.000000e+00> : vector<8x128xf32>
    %3 = tpu.matmul %0, %2, %cst {dimension_numbers = #tpu.dot_dimension_numbers<[1], [0], [0], [1], [0, 0, 1, 1], [], []>} : vector<8x784xbf16>, vector<784x128xbf16>, vector<8x128xf32> -> vector<8x128xf32>
    %c0_5 = arith.constant 0 : index
    %c0_6 = arith.constant 0 : index
    %4 = vector.load %arg4[%c0_5, %c0_6] : memref<1x128xf32, #tpu.memory_space<vmem>>, vector<1x128xf32>
    %5 = vector.broadcast %4 : vector<1x128xf32> to vector<8x128xf32>
    %6 = arith.addf %3, %5 : vector<8x128xf32>
    %cst_7 = arith.constant 0.000000e+00 : f32
    %7 = vector.broadcast %cst_7 : f32 to vector<8x128xf32>
    %8 = arith.maximumf %6, %7 : vector<8x128xf32>
    %9 = arith.truncf %8 : vector<8x128xf32> to vector<8x128xbf16>
    %c0_8 = arith.constant 0 : index
    %c0_9 = arith.constant 0 : index
    %10 = vector.load %arg5[%c0_8, %c0_9] : memref<128x64xbf16, #tpu.memory_space<vmem>>, vector<128x64xbf16>
    %cst_10 = arith.constant dense<0.000000e+00> : vector<8x64xf32>
    %11 = tpu.matmul %9, %10, %cst_10 {dimension_numbers = #tpu.dot_dimension_numbers<[1], [0], [0], [1], [0, 0, 1, 1], [], []>} : vector<8x128xbf16>, vector<128x64xbf16>, vector<8x64xf32> -> vector<8x64xf32>
    %c0_11 = arith.constant 0 : index
    %c0_12 = arith.constant 0 : index
    %12 = vector.load %arg6[%c0_11, %c0_12] : memref<1x64xf32, #tpu.memory_space<vmem>>, vector<1x64xf32>
    %13 = vector.broadcast %12 : vector<1x64xf32> to vector<8x64xf32>
    %14 = arith.addf %11, %13 : vector<8x64xf32>
    %cst_13 = arith.constant 0.000000e+00 : f32
    %15 = vector.broadcast %cst_13 : f32 to vector<8x64xf32>
    %16 = arith.maximumf %14, %15 : vector<8x64xf32>
    %17 = arith.truncf %16 : vector<8x64xf32> to vector<8x64xbf16>
    %c0_14 = arith.constant 0 : index
    %c0_15 = arith.constant 0 : index
    %18 = vector.load %arg7[%c0_14, %c0_15] : memref<64x128xbf16, #tpu.memory_space<vmem>>, vector<64x128xbf16>
    %cst_16 = arith.constant dense<0.000000e+00> : vector<8x128xf32>
    %19 = tpu.matmul %17, %18, %cst_16 {dimension_numbers = #tpu.dot_dimension_numbers<[1], [0], [0], [1], [0, 0, 1, 1], [], []>} : vector<8x64xbf16>, vector<64x128xbf16>, vector<8x128xf32> -> vector<8x128xf32>
    %c0_17 = arith.constant 0 : index
    %c0_18 = arith.constant 0 : index
    %20 = vector.load %arg8[%c0_17, %c0_18] : memref<1x128xf32, #tpu.memory_space<vmem>>, vector<1x128xf32>
    %21 = vector.broadcast %20 : vector<1x128xf32> to vector<8x128xf32>
    %22 = arith.addf %19, %21 : vector<8x128xf32>
    %23 = vector.extract_strided_slice %22 {offsets = [0, 0], sizes = [8, 64], strides = [1, 1]} : vector<8x128xf32> to vector<8x64xf32>
    %24 = vector.extract_strided_slice %22 {offsets = [0, 64], sizes = [8, 64], strides = [1, 1]} : vector<8x128xf32> to vector<8x64xf32>
    %cst_19 = arith.constant 5.000000e-01 : f32
    %25 = vector.broadcast %cst_19 : f32 to vector<8x64xf32>
    %26 = arith.mulf %25, %24 : vector<8x64xf32>
    %27 = math.exp %26 : vector<8x64xf32>
    %28 = arith.mulf %1, %27 : vector<8x64xf32>
    %29 = arith.addf %28, %23 : vector<8x64xf32>
    %30 = arith.truncf %29 : vector<8x64xf32> to vector<8x64xbf16>
    %c0_20 = arith.constant 0 : index
    %c0_21 = arith.constant 0 : index
    %31 = vector.load %arg9[%c0_20, %c0_21] : memref<64x64xbf16, #tpu.memory_space<vmem>>, vector<64x64xbf16>
    %cst_22 = arith.constant dense<0.000000e+00> : vector<8x64xf32>
    %32 = tpu.matmul %30, %31, %cst_22 {dimension_numbers = #tpu.dot_dimension_numbers<[1], [0], [0], [1], [0, 0, 1, 1], [], []>} : vector<8x64xbf16>, vector<64x64xbf16>, vector<8x64xf32> -> vector<8x64xf32>
    %c0_23 = arith.constant 0 : index
    %c0_24 = arith.constant 0 : index
    %33 = vector.load %arg10[%c0_23, %c0_24] : memref<1x64xf32, #tpu.memory_space<vmem>>, vector<1x64xf32>
    %34 = vector.broadcast %33 : vector<1x64xf32> to vector<8x64xf32>
    %35 = arith.addf %32, %34 : vector<8x64xf32>
    %cst_25 = arith.constant 0.000000e+00 : f32
    %36 = vector.broadcast %cst_25 : f32 to vector<8x64xf32>
    %37 = arith.maximumf %35, %36 : vector<8x64xf32>
    %38 = arith.truncf %37 : vector<8x64xf32> to vector<8x64xbf16>
    %c0_26 = arith.constant 0 : index
    %c0_27 = arith.constant 0 : index
    %39 = vector.load %arg11[%c0_26, %c0_27] : memref<64x128xbf16, #tpu.memory_space<vmem>>, vector<64x128xbf16>
    %cst_28 = arith.constant dense<0.000000e+00> : vector<8x128xf32>
    %40 = tpu.matmul %38, %39, %cst_28 {dimension_numbers = #tpu.dot_dimension_numbers<[1], [0], [0], [1], [0, 0, 1, 1], [], []>} : vector<8x64xbf16>, vector<64x128xbf16>, vector<8x128xf32> -> vector<8x128xf32>
    %c0_29 = arith.constant 0 : index
    %c0_30 = arith.constant 0 : index
    %41 = vector.load %arg12[%c0_29, %c0_30] : memref<1x128xf32, #tpu.memory_space<vmem>>, vector<1x128xf32>
    %42 = vector.broadcast %41 : vector<1x128xf32> to vector<8x128xf32>
    %43 = arith.addf %40, %42 : vector<8x128xf32>
    %cst_31 = arith.constant 0.000000e+00 : f32
    %44 = vector.broadcast %cst_31 : f32 to vector<8x128xf32>
    %45 = arith.maximumf %43, %44 : vector<8x128xf32>
    %46 = arith.truncf %45 : vector<8x128xf32> to vector<8x128xbf16>
    %c0_32 = arith.constant 0 : index
    %c0_33 = arith.constant 0 : index
    %47 = vector.load %arg13[%c0_32, %c0_33] : memref<128x784xbf16, #tpu.memory_space<vmem>>, vector<128x784xbf16>
    %cst_34 = arith.constant dense<0.000000e+00> : vector<8x784xf32>
    %48 = tpu.matmul %46, %47, %cst_34 {dimension_numbers = #tpu.dot_dimension_numbers<[1], [0], [0], [1], [0, 0, 1, 1], [], []>} : vector<8x128xbf16>, vector<128x784xbf16>, vector<8x784xf32> -> vector<8x784xf32>
    %c0_35 = arith.constant 0 : index
    %c0_36 = arith.constant 0 : index
    %49 = vector.load %arg14[%c0_35, %c0_36] : memref<1x784xf32, #tpu.memory_space<vmem>>, vector<1x784xf32>
    %50 = vector.broadcast %49 : vector<1x784xf32> to vector<8x784xf32>
    %51 = arith.addf %48, %50 : vector<8x784xf32>
    %52 = arith.negf %51 : vector<8x784xf32>
    %53 = math.exp %52 : vector<8x784xf32>
    %cst_37 = arith.constant 1.000000e+00 : f32
    %54 = vector.broadcast %cst_37 : f32 to vector<8x784xf32>
    %55 = arith.addf %54, %53 : vector<8x784xf32>
    %56 = arith.divf %54, %55 : vector<8x784xf32>
    %57 = arith.truncf %56 : vector<8x784xf32> to vector<8x784xbf16>
    %c0_38 = arith.constant 0 : index
    %c0_39 = arith.constant 0 : index
    %58 = vector.load %arg15[%c0_38, %c0_39] : memref<8x784xbf16, #tpu.memory_space<vmem>>, vector<8x784xbf16>
    tpu.vector_store %arg15[%c0_38, %c0_39], %57 {strides = array<i32>} : memref<8x784xbf16, #tpu.memory_space<vmem>>, vector<8x784xbf16>,
    %c0_40 = arith.constant 0 : index
    %c0_41 = arith.constant 0 : index
    %59 = vector.load %arg16[%c0_40, %c0_41] : memref<8x128xf32, #tpu.memory_space<vmem>>, vector<8x128xf32>
    tpu.vector_store %arg16[%c0_40, %c0_41], %22 {strides = array<i32>} : memref<8x128xf32, #tpu.memory_space<vmem>>, vector<8x128xf32>,
    return
  }
  func.func @transform_0(%arg0: i32) -> (i32, i32) {
    %c0_i32 = arith.constant 0 : i32
    %c0_i32_0 = arith.constant 0 : i32
    return %arg0, %c0_i32 : i32, i32
  }
  func.func @transform_1(%arg0: i32) -> (i32, i32) {
    %c0_i32 = arith.constant 0 : i32
    %c0_i32_0 = arith.constant 0 : i32
    return %arg0, %c0_i32 : i32, i32
  }
  func.func @transform_2(%arg0: i32) -> (i32, i32) {
    %c0_i32 = arith.constant 0 : i32
    %c0_i32_0 = arith.constant 0 : i32
    %c0_i32_1 = arith.constant 0 : i32
    return %c0_i32, %c0_i32_0 : i32, i32
  }
  func.func @transform_3(%arg0: i32) -> (i32, i32) {
    %c0_i32 = arith.constant 0 : i32
    %c0_i32_0 = arith.constant 0 : i32
    %c0_i32_1 = arith.constant 0 : i32
    return %c0_i32, %c0_i32_0 : i32, i32
  }
  func.func @transform_4(%arg0: i32) -> (i32, i32) {
    %c0_i32 = arith.constant 0 : i32
    %c0_i32_0 = arith.constant 0 : i32
    %c0_i32_1 = arith.constant 0 : i32
    return %c0_i32, %c0_i32_0 : i32, i32
  }
  func.func @transform_5(%arg0: i32) -> (i32, i32) {
    %c0_i32 = arith.constant 0 : i32
    %c0_i32_0 = arith.constant 0 : i32
    %c0_i32_1 = arith.constant 0 : i32
    return %c0_i32, %c0_i32_0 : i32, i32
  }
  func.func @transform_6(%arg0: i32) -> (i32, i32) {
    %c0_i32 = arith.constant 0 : i32
    %c0_i32_0 = arith.constant 0 : i32
    %c0_i32_1 = arith.constant 0 : i32
    return %c0_i32, %c0_i32_0 : i32, i32
  }
  func.func @transform_7(%arg0: i32) -> (i32, i32) {
    %c0_i32 = arith.constant 0 : i32
    %c0_i32_0 = arith.constant 0 : i32
    %c0_i32_1 = arith.constant 0 : i32
    return %c0_i32, %c0_i32_0 : i32, i32
  }
  func.func @transform_8(%arg0: i32) -> (i32, i32) {
    %c0_i32 = arith.constant 0 : i32
    %c0_i32_0 = arith.constant 0 : i32
    %c0_i32_1 = arith.constant 0 : i32
    return %c0_i32, %c0_i32_0 : i32, i32
  }
  func.func @transform_9(%arg0: i32) -> (i32, i32) {
    %c0_i32 = arith.constant 0 : i32
    %c0_i32_0 = arith.constant 0 : i32
    %c0_i32_1 = arith.constant 0 : i32
    return %c0_i32, %c0_i32_0 : i32, i32
  }
  func.func @transform_10(%arg0: i32) -> (i32, i32) {
    %c0_i32 = arith.constant 0 : i32
    %c0_i32_0 = arith.constant 0 : i32
    %c0_i32_1 = arith.constant 0 : i32
    return %c0_i32, %c0_i32_0 : i32, i32
  }
  func.func @transform_11(%arg0: i32) -> (i32, i32) {
    %c0_i32 = arith.constant 0 : i32
    %c0_i32_0 = arith.constant 0 : i32
    %c0_i32_1 = arith.constant 0 : i32
    return %c0_i32, %c0_i32_0 : i32, i32
  }
  func.func @transform_12(%arg0: i32) -> (i32, i32) {
    %c0_i32 = arith.constant 0 : i32
    %c0_i32_0 = arith.constant 0 : i32
    %c0_i32_1 = arith.constant 0 : i32
    return %c0_i32, %c0_i32_0 : i32, i32
  }
  func.func @transform_13(%arg0: i32) -> (i32, i32) {
    %c0_i32 = arith.constant 0 : i32
    %c0_i32_0 = arith.constant 0 : i32
    %c0_i32_1 = arith.constant 0 : i32
    return %c0_i32, %c0_i32_0 : i32, i32
  }
  func.func @transform_14(%arg0: i32) -> (i32, i32) {
    %c0_i32 = arith.constant 0 : i32
    %c0_i32_0 = arith.constant 0 : i32
    return %arg0, %c0_i32 : i32, i32
  }
  func.func @transform_15(%arg0: i32) -> (i32, i32) {
    %c0_i32 = arith.constant 0 : i32
    %c0_i32_0 = arith.constant 0 : i32
    return %arg0, %c0_i32 : i32, i32
  }
}

</mosaic_0001>

<llo_original>
// kernel: vae_forward.1
$region0: #{vae_forward.1}
  #allocation0 [shape = 'u32[]', space=smem, size = 0x4, offset = 0x4, fixed_abs, tag = 'smem constant byte address 0x4 - core index']
  #allocation1 [shape = 'u32[144,128]{1,0:T(1,128)}', space=vmem, size = 0x12000, scoped, tag = 'internal scratch']
  %s0 = inlined_call_operand.vmem [shape: bf16[8,784], index: 0, kind: input, shape index: {}]
  %s1 = inlined_call_operand.vmem [shape: f32[8,64], index: 1, kind: input, shape index: {}]
  %s2 = inlined_call_operand.vmem [shape: bf16[784,128], index: 2, kind: input, shape index: {}]
  %s3 = inlined_call_operand.vmem [shape: f32[1,128], index: 3, kind: input, shape index: {}]
  %s4 = inlined_call_operand.vmem [shape: bf16[128,64], index: 4, kind: input, shape index: {}]
  %s5 = inlined_call_operand.vmem [shape: f32[1,64], index: 5, kind: input, shape index: {}]
  %s6 = inlined_call_operand.vmem [shape: bf16[64,128], index: 6, kind: input, shape index: {}]
  %s7 = inlined_call_operand.vmem [shape: f32[1,128], index: 7, kind: input, shape index: {}]
  %s8 = inlined_call_operand.vmem [shape: bf16[64,64], index: 8, kind: input, shape index: {}]
  %s9 = inlined_call_operand.vmem [shape: f32[1,64], index: 9, kind: input, shape index: {}]
  %s10 = inlined_call_operand.vmem [shape: bf16[64,128], index: 10, kind: input, shape index: {}]
  %s11 = inlined_call_operand.vmem [shape: f32[1,128], index: 11, kind: input, shape index: {}]
  %s12 = inlined_call_operand.vmem [shape: bf16[128,784], index: 12, kind: input, shape index: {}]
  %s13 = inlined_call_operand.vmem [shape: f32[1,784], index: 13, kind: input, shape index: {}]
  %s14 = inlined_call_operand.hbm [shape: bf16[8,784], index: 14, kind: output, shape index: {0}]
  %s15 = inlined_call_operand.vmem [shape: f32[8,128], index: 15, kind: output, shape index: {1}]
  %16 = xla_tuple %s14, %s15
  %s17 = sld [smem:[#allocation0]]
  $region74: #{vae_forward.1} parent=0
    _
  %s19 = ssub.s32 1, %s17
  %s20 = scalar_select 0, %s19, %s17
  $region1: #{vae_forward.1} parent=0
    #allocation2 [shape = 'u8[14336]{0}', space=vmem, size = 0x3800, scoped, tag = 'output window, operand 0, single buffered']
    #allocation3 [shape = 's32[1]{0}', space=sflag, size = 0x4, scoped, tag = 'scoped memory for vae_forward.1']
    %21 = vsyncpa [#allocation3], 0
    // Predicated region
    $region2: #{vae_forward.1} parent=1 // pred_check
      _
    $region3: #{vae_forward.1} parent=1 // pred_check_branch
      %23 = sbr.rel (0) target = $region5
    $region4: #{vae_forward.1} parent=1 // pred_region
      _
    $region5: #{vae_forward.1} parent=1 // pred_fallthru
      _
    // Predicated region
    $region6: #{vae_forward.1} parent=1 // pred_check
      _
    $region7: #{vae_forward.1} parent=1 // pred_check_branch
      %25 = sbr.rel (0) target = $region9
    $region8: #{vae_forward.1} parent=1 // pred_region
      _
    $region9: #{vae_forward.1} parent=1 // pred_fallthru
      _
    // Predicated region
    $region10: #{vae_forward.1} parent=1 // pred_check
      _
    $region11: #{vae_forward.1} parent=1 // pred_check_branch
      %27 = sbr.rel (0) target = $region13
    $region12: #{vae_forward.1} parent=1 // pred_region
      _
    $region13: #{vae_forward.1} parent=1 // pred_fallthru
      _
    // Predicated region
    $region14: #{vae_forward.1} parent=1 // pred_check
      _
    $region15: #{vae_forward.1} parent=1 // pred_check_branch
      %29 = sbr.rel (0) target = $region17
    $region16: #{vae_forward.1} parent=1 // pred_region
      _
    $region17: #{vae_forward.1} parent=1 // pred_fallthru
      _
    // Predicated region
    $region18: #{vae_forward.1} parent=1 // pred_check
      _
    $region19: #{vae_forward.1} parent=1 // pred_check_branch
      %31 = sbr.rel (0) target = $region21
    $region20: #{vae_forward.1} parent=1 // pred_region
      _
    $region21: #{vae_forward.1} parent=1 // pred_fallthru
      _
    // Predicated region
    $region22: #{vae_forward.1} parent=1 // pred_check
      _
    $region23: #{vae_forward.1} parent=1 // pred_check_branch
      %33 = sbr.rel (0) target = $region25
    $region24: #{vae_forward.1} parent=1 // pred_region
      _
    $region25: #{vae_forward.1} parent=1 // pred_fallthru
      _
    // Predicated region
    $region26: #{vae_forward.1} parent=1 // pred_check
      _
    $region27: #{vae_forward.1} parent=1 // pred_check_branch
      %35 = sbr.rel (0) target = $region29
    $region28: #{vae_forward.1} parent=1 // pred_region
      _
    $region29: #{vae_forward.1} parent=1 // pred_fallthru
      _
    // Predicated region
    $region30: #{vae_forward.1} parent=1 // pred_check
      _
    $region31: #{vae_forward.1} parent=1 // pred_check_branch
      %37 = sbr.rel (0) target = $region33
    $region32: #{vae_forward.1} parent=1 // pred_region
      _
    $region33: #{vae_forward.1} parent=1 // pred_fallthru
      _
    // Predicated region
    $region34: #{vae_forward.1} parent=1 // pred_check
      _
    $region35: #{vae_forward.1} parent=1 // pred_check_branch
      %39 = sbr.rel (0) target = $region37
    $region36: #{vae_forward.1} parent=1 // pred_region
      _
    $region37: #{vae_forward.1} parent=1 // pred_fallthru
      _
    // Predicated region
    $region38: #{vae_forward.1} parent=1 // pred_check
      _
    $region39: #{vae_forward.1} parent=1 // pred_check_branch
      %41 = sbr.rel (0) target = $region41
    $region40: #{vae_forward.1} parent=1 // pred_region
      _
    $region41: #{vae_forward.1} parent=1 // pred_fallthru
      _
    // Predicated region
    $region42: #{vae_forward.1} parent=1 // pred_check
      _
    $region43: #{vae_forward.1} parent=1 // pred_check_branch
      %43 = sbr.rel (0) target = $region45
    $region44: #{vae_forward.1} parent=1 // pred_region
      _
    $region45: #{vae_forward.1} parent=1 // pred_fallthru
      _
    // Predicated region
    $region46: #{vae_forward.1} parent=1 // pred_check
      _
    $region47: #{vae_forward.1} parent=1 // pred_check_branch
      %45 = sbr.rel (0) target = $region49
    $region48: #{vae_forward.1} parent=1 // pred_region
      _
    $region49: #{vae_forward.1} parent=1 // pred_fallthru
      _
    // Predicated region
    $region50: #{vae_forward.1} parent=1 // pred_check
      _
    $region51: #{vae_forward.1} parent=1 // pred_check_branch
      %47 = sbr.rel (0) target = $region53
    $region52: #{vae_forward.1} parent=1 // pred_region
      _
    $region53: #{vae_forward.1} parent=1 // pred_fallthru
      _
    // Predicated region
    $region54: #{vae_forward.1} parent=1 // pred_check
      _
    $region55: #{vae_forward.1} parent=1 // pred_check_branch
      %49 = sbr.rel (0) target = $region57
    $region56: #{vae_forward.1} parent=1 // pred_region
      _
    $region57: #{vae_forward.1} parent=1 // pred_fallthru
      _
    %v51 = vld [vmem:[%s0] sm:$0xff]
    %v52 = vld [vmem:[%s0 + $0x8] sm:$0xff]
    %v53 = vld [vmem:[%s0 + $0x10] sm:$0xff]
    %v54 = vld [vmem:[%s0 + $0x18] sm:$0xf]
    %v55 = vld [vmem:[%s1] sm:$0xff]
    %v56 = vld [vmem:[%s2] sm:$0xf]
    %v57 = vld [vmem:[%s2 + $0x4] sm:$0xf]
    %v58 = vld [vmem:[%s2 + $0x8] sm:$0xf]
    %v59 = vld [vmem:[%s2 + $0xc] sm:$0xf]
    %v60 = vld [vmem:[%s2 + $0x10] sm:$0xf]
    %v61 = vld [vmem:[%s2 + $0x14] sm:$0xf]
    %v62 = vld [vmem:[%s2 + $0x18] sm:$0xf]
    %v63 = vld [vmem:[%s2 + $0x1c] sm:$0xf]
    %v64 = vld [vmem:[%s2 + $0x20] sm:$0xf]
    %v65 = vld [vmem:[%s2 + $0x24] sm:$0xf]
    %v66 = vld [vmem:[%s2 + $0x28] sm:$0xf]
    %v67 = vld [vmem:[%s2 + $0x2c] sm:$0xf]
    %v68 = vld [vmem:[%s2 + $0x30] sm:$0xf]
    %v69 = vld [vmem:[%s2 + $0x34] sm:$0xf]
    %v70 = vld [vmem:[%s2 + $0x38] sm:$0xf]
    %v71 = vld [vmem:[%s2 + $0x3c] sm:$0xf]
    %v72 = vld [vmem:[%s2 + $0x40] sm:$0xf]
    %v73 = vld [vmem:[%s2 + $0x44] sm:$0xf]
    %v74 = vld [vmem:[%s2 + $0x48] sm:$0xf]
    %v75 = vld [vmem:[%s2 + $0x4c] sm:$0xf]
    %v76 = vld [vmem:[%s2 + $0x50] sm:$0xf]
    %v77 = vld [vmem:[%s2 + $0x54] sm:$0xf]
    %v78 = vld [vmem:[%s2 + $0x58] sm:$0xf]
    %v79 = vld [vmem:[%s2 + $0x5c] sm:$0xf]
    %v80 = vld [vmem:[%s2 + $0x60] sm:$0xf]
    %v81 = vld [vmem:[%s2 + $0x64] sm:$0xf]
    %v82 = vld [vmem:[%s2 + $0x68] sm:$0xf]
    %v83 = vld [vmem:[%s2 + $0x6c] sm:$0xf]
    %v84 = vld [vmem:[%s2 + $0x70] sm:$0xf]
    %v85 = vld [vmem:[%s2 + $0x74] sm:$0xf]
    %v86 = vld [vmem:[%s2 + $0x78] sm:$0xf]
    %v87 = vld [vmem:[%s2 + $0x7c] sm:$0xf]
    %v88 = vld [vmem:[%s2 + $0x80] sm:$0xf]
    %v89 = vld [vmem:[%s2 + $0x84] sm:$0xf]
    %v90 = vld [vmem:[%s2 + $0x88] sm:$0xf]
    %v91 = vld [vmem:[%s2 + $0x8c] sm:$0xf]
    %v92 = vld [vmem:[%s2 + $0x90] sm:$0xf]
    %v93 = vld [vmem:[%s2 + $0x94] sm:$0xf]
    %v94 = vld [vmem:[%s2 + $0x98] sm:$0xf]
    %v95 = vld [vmem:[%s2 + $0x9c] sm:$0xf]
    %v96 = vld [vmem:[%s2 + $0xa0] sm:$0xf]
    %v97 = vld [vmem:[%s2 + $0xa4] sm:$0xf]
    %v98 = vld [vmem:[%s2 + $0xa8] sm:$0xf]
    %v99 = vld [vmem:[%s2 + $0xac] sm:$0xf]
    %v100 = vld [vmem:[%s2 + $0xb0] sm:$0xf]
    %v101 = vld [vmem:[%s2 + $0xb4] sm:$0xf]
    %v102 = vld [vmem:[%s2 + $0xb8] sm:$0xf]
    %v103 = vld [vmem:[%s2 + $0xbc] sm:$0xf]
    %v104 = vld [vmem:[%s2 + $0xc0] sm:$0xf]
    %v105 = vld [vmem:[%s2 + $0xc4] sm:$0xf]
    %v106 = vld [vmem:[%s2 + $0xc8] sm:$0xf]
    %v107 = vld [vmem:[%s2 + $0xcc] sm:$0xf]
    %v108 = vld [vmem:[%s2 + $0xd0] sm:$0xf]
    %v109 = vld [vmem:[%s2 + $0xd4] sm:$0xf]
    %v110 = vld [vmem:[%s2 + $0xd8] sm:$0xf]
    %v111 = vld [vmem:[%s2 + $0xdc] sm:$0xf]
    %v112 = vld [vmem:[%s2 + $0xe0] sm:$0xf]
    %v113 = vld [vmem:[%s2 + $0xe4] sm:$0xf]
    %v114 = vld [vmem:[%s2 + $0xe8] sm:$0xf]
    %v115 = vld [vmem:[%s2 + $0xec] sm:$0xf]
    %v116 = vld [vmem:[%s2 + $0xf0] sm:$0xf]
    %v117 = vld [vmem:[%s2 + $0xf4] sm:$0xf]
    %v118 = vld [vmem:[%s2 + $0xf8] sm:$0xf]
    %v119 = vld [vmem:[%s2 + $0xfc] sm:$0xf]
    %v120 = vld [vmem:[%s2 + $0x100] sm:$0xf]
    %v121 = vld [vmem:[%s2 + $0x104] sm:$0xf]
    %v122 = vld [vmem:[%s2 + $0x108] sm:$0xf]
    %v123 = vld [vmem:[%s2 + $0x10c] sm:$0xf]
    %v124 = vld [vmem:[%s2 + $0x110] sm:$0xf]
    %v125 = vld [vmem:[%s2 + $0x114] sm:$0xf]
    %v126 = vld [vmem:[%s2 + $0x118] sm:$0xf]
    %v127 = vld [vmem:[%s2 + $0x11c] sm:$0xf]
    %v128 = vld [vmem:[%s2 + $0x120] sm:$0xf]
    %v129 = vld [vmem:[%s2 + $0x124] sm:$0xf]
    %v130 = vld [vmem:[%s2 + $0x128] sm:$0xf]
    %v131 = vld [vmem:[%s2 + $0x12c] sm:$0xf]
    %v132 = vld [vmem:[%s2 + $0x130] sm:$0xf]
    %v133 = vld [vmem:[%s2 + $0x134] sm:$0xf]
    %v134 = vld [vmem:[%s2 + $0x138] sm:$0xf]
    %v135 = vld [vmem:[%s2 + $0x13c] sm:$0xf]
    %v136 = vld [vmem:[%s2 + $0x140] sm:$0xf]
    %v137 = vld [vmem:[%s2 + $0x144] sm:$0xf]
    %v138 = vld [vmem:[%s2 + $0x148] sm:$0xf]
    %v139 = vld [vmem:[%s2 + $0x14c] sm:$0xf]
    %v140 = vld [vmem:[%s2 + $0x150] sm:$0xf]
    %v141 = vld [vmem:[%s2 + $0x154] sm:$0xf]
    %v142 = vld [vmem:[%s2 + $0x158] sm:$0xf]
    %v143 = vld [vmem:[%s2 + $0x15c] sm:$0xf]
    %v144 = vld [vmem:[%s2 + $0x160] sm:$0xf]
    %v145 = vld [vmem:[%s2 + $0x164] sm:$0xf]
    %v146 = vld [vmem:[%s2 + $0x168] sm:$0xf]
    %v147 = vld [vmem:[%s2 + $0x16c] sm:$0xf]
    %v148 = vld [vmem:[%s2 + $0x170] sm:$0xf]
    %v149 = vld [vmem:[%s2 + $0x174] sm:$0xf]
    %v150 = vld [vmem:[%s2 + $0x178] sm:$0xf]
    %v151 = vld [vmem:[%s2 + $0x17c] sm:$0xf]
    %v152 = vld [vmem:[%s2 + $0x180] sm:$0xf]
    %v153 = vld [vmem:[%s2 + $0x184] sm:$0xf]
    %v154 = vld [vmem:[%s3] sm:$0x1]
    %v156 = vlaneseq
    %v157 = vshrl.u32 %v156, 7
    %v158 = vsub.s32 0, %v157
    %v159 = vrot.slane %v154, %v158
    %v165 = vunpack.c.l.b16 %v51
    %v166 = vunpack.c.h.b16 %v51
    %v167 = vunpack.c.l.b16 %v52
    %v168 = vunpack.c.h.b16 %v52
    %v169 = vunpack.c.l.b16 %v53
    %v170 = vunpack.c.h.b16 %v53
    %v171 = vunpack.c.l.b16 %v54
    %v172 = vpack.c.b16 %v165, %v165
    %v173 = vpack.c.b16 %v166, %v166
    %v174 = vpack.c.b16 %v167, %v167
    %v175 = vpack.c.b16 %v168, %v168
    %v176 = vpack.c.b16 %v169, %v169
    %v177 = vpack.c.b16 %v170, %v170
    %v178 = vpack.c.b16 %v171, %v171
    %v283 = vunpack.c.l.b16 %v56
    %v284 = vunpack.c.l.b16 %v57
    %v285 = vunpack.c.l.b16 %v58
    %v286 = vunpack.c.l.b16 %v59
    %v287 = vunpack.c.l.b16 %v60
    %v288 = vunpack.c.l.b16 %v61
    %v289 = vunpack.c.l.b16 %v62
    %v290 = vunpack.c.l.b16 %v63
    %v291 = vunpack.c.l.b16 %v64
    %v292 = vunpack.c.l.b16 %v65
    %v293 = vunpack.c.l.b16 %v66
    %v294 = vunpack.c.l.b16 %v67
    %v295 = vunpack.c.l.b16 %v68
    %v296 = vunpack.c.l.b16 %v69
    %v297 = vunpack.c.l.b16 %v70
    %v298 = vunpack.c.l.b16 %v71
    %v299 = vunpack.c.l.b16 %v72
    %v300 = vunpack.c.l.b16 %v73
    %v301 = vunpack.c.l.b16 %v74
    %v302 = vunpack.c.l.b16 %v75
    %v303 = vunpack.c.l.b16 %v76
    %v304 = vunpack.c.l.b16 %v77
    %v305 = vunpack.c.l.b16 %v78
    %v306 = vunpack.c.l.b16 %v79
    %v307 = vunpack.c.l.b16 %v80
    %v308 = vunpack.c.l.b16 %v81
    %v309 = vunpack.c.l.b16 %v82
    %v310 = vunpack.c.l.b16 %v83
    %v311 = vunpack.c.l.b16 %v84
    %v312 = vunpack.c.l.b16 %v85
    %v313 = vunpack.c.l.b16 %v86
    %v314 = vunpack.c.l.b16 %v87
    %v315 = vunpack.c.l.b16 %v88
    %v316 = vunpack.c.l.b16 %v89
    %v317 = vunpack.c.l.b16 %v90
    %v318 = vunpack.c.l.b16 %v91
    %v319 = vunpack.c.l.b16 %v92
    %v320 = vunpack.c.l.b16 %v93
    %v321 = vunpack.c.l.b16 %v94
    %v322 = vunpack.c.l.b16 %v95
    %v323 = vunpack.c.l.b16 %v96
    %v324 = vunpack.c.l.b16 %v97
    %v325 = vunpack.c.l.b16 %v98
    %v326 = vunpack.c.l.b16 %v99
    %v327 = vunpack.c.l.b16 %v100
    %v328 = vunpack.c.l.b16 %v101
    %v329 = vunpack.c.l.b16 %v102
    %v330 = vunpack.c.l.b16 %v103
    %v331 = vunpack.c.l.b16 %v104
    %v332 = vunpack.c.l.b16 %v105
    %v333 = vunpack.c.l.b16 %v106
    %v334 = vunpack.c.l.b16 %v107
    %v335 = vunpack.c.l.b16 %v108
    %v336 = vunpack.c.l.b16 %v109
    %v337 = vunpack.c.l.b16 %v110
    %v338 = vunpack.c.l.b16 %v111
    %v339 = vunpack.c.l.b16 %v112
    %v340 = vunpack.c.l.b16 %v113
    %v341 = vunpack.c.l.b16 %v114
    %v342 = vunpack.c.l.b16 %v115
    %v343 = vunpack.c.l.b16 %v116
    %v344 = vunpack.c.l.b16 %v117
    %v345 = vunpack.c.l.b16 %v118
    %v346 = vunpack.c.l.b16 %v119
    %v347 = vunpack.c.l.b16 %v120
    %v348 = vunpack.c.l.b16 %v121
    %v349 = vunpack.c.l.b16 %v122
    %v350 = vunpack.c.l.b16 %v123
    %v351 = vunpack.c.l.b16 %v124
    %v352 = vunpack.c.l.b16 %v125
    %v353 = vunpack.c.l.b16 %v126
    %v354 = vunpack.c.l.b16 %v127
    %v355 = vunpack.c.l.b16 %v128
    %v356 = vunpack.c.l.b16 %v129
    %v357 = vunpack.c.l.b16 %v130
    %v358 = vunpack.c.l.b16 %v131
    %v359 = vunpack.c.l.b16 %v132
    %v360 = vunpack.c.l.b16 %v133
    %v361 = vunpack.c.l.b16 %v134
    %v362 = vunpack.c.l.b16 %v135
    %v363 = vunpack.c.l.b16 %v136
    %v364 = vunpack.c.l.b16 %v137
    %v365 = vunpack.c.l.b16 %v138
    %v366 = vunpack.c.l.b16 %v139
    %v367 = vunpack.c.l.b16 %v140
    %v368 = vunpack.c.l.b16 %v141
    %v369 = vunpack.c.l.b16 %v142
    %v370 = vunpack.c.l.b16 %v143
    %v371 = vunpack.c.l.b16 %v144
    %v372 = vunpack.c.l.b16 %v145
    %v373 = vunpack.c.l.b16 %v146
    %v374 = vunpack.c.l.b16 %v147
    %v375 = vunpack.c.l.b16 %v148
    %v376 = vunpack.c.l.b16 %v149
    %v377 = vunpack.c.l.b16 %v150
    %v378 = vunpack.c.l.b16 %v151
    %v379 = vunpack.c.l.b16 %v152
    %v380 = vunpack.c.l.b16 %v153
    %v381 = vpack.c.b16 %v284, %v283
    %v382 = vpack.c.b16 %v286, %v285
    %v383 = vpack.c.b16 %v288, %v287
    %v384 = vpack.c.b16 %v290, %v289
    %v385 = vpack.c.b16 %v292, %v291
    %v386 = vpack.c.b16 %v294, %v293
    %v387 = vpack.c.b16 %v296, %v295
    %v388 = vpack.c.b16 %v298, %v297
    %v389 = vpack.c.b16 %v300, %v299
    %v390 = vpack.c.b16 %v302, %v301
    %v391 = vpack.c.b16 %v304, %v303
    %v392 = vpack.c.b16 %v306, %v305
    %v393 = vpack.c.b16 %v308, %v307
    %v394 = vpack.c.b16 %v310, %v309
    %v395 = vpack.c.b16 %v312, %v311
    %v396 = vpack.c.b16 %v314, %v313
    %v397 = vpack.c.b16 %v316, %v315
    %v398 = vpack.c.b16 %v318, %v317
    %v399 = vpack.c.b16 %v320, %v319
    %v400 = vpack.c.b16 %v322, %v321
    %v401 = vpack.c.b16 %v324, %v323
    %v402 = vpack.c.b16 %v326, %v325
    %v403 = vpack.c.b16 %v328, %v327
    %v404 = vpack.c.b16 %v330, %v329
    %v405 = vpack.c.b16 %v332, %v331
    %v406 = vpack.c.b16 %v334, %v333
    %v407 = vpack.c.b16 %v336, %v335
    %v408 = vpack.c.b16 %v338, %v337
    %v409 = vpack.c.b16 %v340, %v339
    %v410 = vpack.c.b16 %v342, %v341
    %v411 = vpack.c.b16 %v344, %v343
    %v412 = vpack.c.b16 %v346, %v345
    %v413 = vpack.c.b16 %v348, %v347
    %v414 = vpack.c.b16 %v350, %v349
    %v415 = vpack.c.b16 %v352, %v351
    %v416 = vpack.c.b16 %v354, %v353
    %v417 = vpack.c.b16 %v356, %v355
    %v418 = vpack.c.b16 %v358, %v357
    %v419 = vpack.c.b16 %v360, %v359
    %v420 = vpack.c.b16 %v362, %v361
    %v421 = vpack.c.b16 %v364, %v363
    %v422 = vpack.c.b16 %v366, %v365
    %v423 = vpack.c.b16 %v368, %v367
    %v424 = vpack.c.b16 %v370, %v369
    %v425 = vpack.c.b16 %v372, %v371
    %v426 = vpack.c.b16 %v374, %v373
    %v427 = vpack.c.b16 %v376, %v375
    %v428 = vpack.c.b16 %v378, %v377
    %v429 = vpack.c.b16 %v380, %v379
    %vm479 = vcmask 130048
    %v481 = vsel %vm479, %v178, 0
    %483 = vmatprep.subr.bf16.mxu0 0
    %484 = vmatpush1.bf16.msra.mxu0 %v381
    %485 = vmatprep.subr.bf16.mxu0 0
    %486 = vmatpush1.bf16.msra.mxu0 %v382
    %487 = vmatprep.subr.bf16.mxu0 0
    %488 = vmatpush1.bf16.msra.mxu0 %v383
    %489 = vmatprep.subr.bf16.mxu0 0
    %490 = vmatpush1.bf16.msra.mxu0 %v384
    %491 = vmatprep.subr.bf16.mxu0 0
    %492 = vmatpush1.bf16.msra.mxu0 %v385
    %493 = vmatprep.subr.bf16.mxu0 0
    %494 = vmatpush1.bf16.msra.mxu0 %v386
    %495 = vmatprep.subr.bf16.mxu0 0
    %496 = vmatpush1.bf16.msra.mxu0 %v387
    %497 = vmatprep.subr.bf16.mxu0 0
    %498 = vmatpush1.bf16.msra.mxu0 %v388
    %499 = vmatprep.subr.bf16.mxu0 0
    %500 = vmatpush1.bf16.msra.mxu0 %v389
    %501 = vmatprep.subr.bf16.mxu0 0
    %502 = vmatpush1.bf16.msra.mxu0 %v390
    %503 = vmatprep.subr.bf16.mxu0 0
    %504 = vmatpush1.bf16.msra.mxu0 %v391
    %505 = vmatprep.subr.bf16.mxu0 0
    %506 = vmatpush1.bf16.msra.mxu0 %v392
    %507 = vmatprep.subr.bf16.mxu0 0
    %508 = vmatpush1.bf16.msra.mxu0 %v393
    %509 = vmatprep.subr.bf16.mxu0 0
    %510 = vmatpush1.bf16.msra.mxu0 %v394
    %511 = vmatprep.subr.bf16.mxu0 0
    %512 = vmatpush1.bf16.msra.mxu0 %v395
    %513 = vmatprep.subr.bf16.mxu0 0
    %514 = vmatpush1.bf16.msra.mxu0 %v396
    %515 = vmatprep.mubr.bf16.mxu0 %v173
    %516 = vmatmul.mubr.bf16.gmra.mrb[0].mxu0 %v172
    %v517 = vpop.f32.mrb[0].mxu0
    %v518 = vadd.f32 %v159, %v517
    %v519 = vpop.f32.mrb[0].mxu0
    %v520 = vpop.f32.mrb[0].mxu0
    %v521 = vpop.f32.mrb[0].mxu0
    %522 = vdwg.mxu0
    %523 = vmatprep.subr.bf16.mxu0 0
    %524 = vmatpush1.bf16.msra.mxu0 %v397
    %525 = vmatprep.subr.bf16.mxu0 0
    %526 = vmatpush1.bf16.msra.mxu0 %v398
    %527 = vmatprep.subr.bf16.mxu0 0
    %528 = vmatpush1.bf16.msra.mxu0 %v399
    %529 = vmatprep.subr.bf16.mxu0 0
    %530 = vmatpush1.bf16.msra.mxu0 %v400
    %531 = vmatprep.subr.bf16.mxu0 0
    %532 = vmatpush1.bf16.msra.mxu0 %v401
    %533 = vmatprep.subr.bf16.mxu0 0
    %534 = vmatpush1.bf16.msra.mxu0 %v402
    %535 = vmatprep.subr.bf16.mxu0 0
    %536 = vmatpush1.bf16.msra.mxu0 %v403
    %537 = vmatprep.subr.bf16.mxu0 0
    %538 = vmatpush1.bf16.msra.mxu0 %v404
    %539 = vmatprep.subr.bf16.mxu0 0
    %540 = vmatpush1.bf16.msra.mxu0 %v405
    %541 = vmatprep.subr.bf16.mxu0 0
    %542 = vmatpush1.bf16.msra.mxu0 %v406
    %543 = vmatprep.subr.bf16.mxu0 0
    %544 = vmatpush1.bf16.msra.mxu0 %v407
    %545 = vmatprep.subr.bf16.mxu0 0
    %546 = vmatpush1.bf16.msra.mxu0 %v408
    %547 = vmatprep.subr.bf16.mxu0 0
    %548 = vmatpush1.bf16.msra.mxu0 %v409
    %549 = vmatprep.subr.bf16.mxu0 0
    %550 = vmatpush1.bf16.msra.mxu0 %v410
    %551 = vmatprep.subr.bf16.mxu0 0
    %552 = vmatpush1.bf16.msra.mxu0 %v411
    %553 = vmatprep.subr.bf16.mxu0 0
    %554 = vmatpush1.bf16.msra.mxu0 %v412
    %555 = vmatprep.mubr.bf16.mxu0 %v175
    %556 = vmatmul.mubr.bf16.gmra.mrb[0].mxu0 %v174
    %v557 = vpop.f32.mrb[0].mxu0
    %v558 = vadd.f32 %v518, %v557
    %v559 = vpop.f32.mrb[0].mxu0
    %v560 = vpop.f32.mrb[0].mxu0
    %v561 = vpop.f32.mrb[0].mxu0
    %562 = vdwg.mxu0
    %563 = vmatprep.subr.bf16.mxu0 0
    %564 = vmatpush1.bf16.msra.mxu0 %v413
    %565 = vmatprep.subr.bf16.mxu0 0
    %566 = vmatpush1.bf16.msra.mxu0 %v414
    %567 = vmatprep.subr.bf16.mxu0 0
    %568 = vmatpush1.bf16.msra.mxu0 %v415
    %569 = vmatprep.subr.bf16.mxu0 0
    %570 = vmatpush1.bf16.msra.mxu0 %v416
    %571 = vmatprep.subr.bf16.mxu0 0
    %572 = vmatpush1.bf16.msra.mxu0 %v417
    %573 = vmatprep.subr.bf16.mxu0 0
    %574 = vmatpush1.bf16.msra.mxu0 %v418
    %575 = vmatprep.subr.bf16.mxu0 0
    %576 = vmatpush1.bf16.msra.mxu0 %v419
    %577 = vmatprep.subr.bf16.mxu0 0
    %578 = vmatpush1.bf16.msra.mxu0 %v420
    %579 = vmatprep.subr.bf16.mxu0 0
    %580 = vmatpush1.bf16.msra.mxu0 %v421
    %581 = vmatprep.subr.bf16.mxu0 0
    %582 = vmatpush1.bf16.msra.mxu0 %v422
    %583 = vmatprep.subr.bf16.mxu0 0
    %584 = vmatpush1.bf16.msra.mxu0 %v423
    %585 = vmatprep.subr.bf16.mxu0 0
    %586 = vmatpush1.bf16.msra.mxu0 %v424
    %587 = vmatprep.subr.bf16.mxu0 0
    %588 = vmatpush1.bf16.msra.mxu0 %v425
    %589 = vmatprep.subr.bf16.mxu0 0
    %590 = vmatpush1.bf16.msra.mxu0 %v426
    %591 = vmatprep.subr.bf16.mxu0 0
    %592 = vmatpush1.bf16.msra.mxu0 %v427
    %593 = vmatprep.subr.bf16.mxu0 0
    %594 = vmatpush1.bf16.msra.mxu0 %v428
    %595 = vmatprep.mubr.bf16.mxu0 %v177
    %596 = vmatmul.mubr.bf16.gmra.mrb[0].mxu0 %v176
    %v597 = vpop.f32.mrb[0].mxu0
    %v598 = vadd.f32 %v558, %v597
    %v599 = vpop.f32.mrb[0].mxu0
    %v600 = vpop.f32.mrb[0].mxu0
    %v601 = vpop.f32.mrb[0].mxu0
    %602 = vdwg.mxu0
    %603 = vmatprep.subr.bf16.mxu0 0
    %604 = vmatpush1.bf16.msra.mxu0 %v429
    %605 = vmatprep.subr.bf16.mxu0 0
    %606 = vmatpush1.bf16.msra.mxu0 0
    %607 = vmatprep.subr.bf16.mxu0 0
    %608 = vmatpush1.bf16.msra.mxu0 0
    %609 = vmatprep.subr.bf16.mxu0 0
    %610 = vmatpush1.bf16.msra.mxu0 0
    %611 = vmatprep.subr.bf16.mxu0 0
    %612 = vmatpush1.bf16.msra.mxu0 0
    %613 = vmatprep.subr.bf16.mxu0 0
    %614 = vmatpush1.bf16.msra.mxu0 0
    %615 = vmatprep.subr.bf16.mxu0 0
    %616 = vmatpush1.bf16.msra.mxu0 0
    %617 = vmatprep.subr.bf16.mxu0 0
    %618 = vmatpush1.bf16.msra.mxu0 0
    %619 = vmatprep.subr.bf16.mxu0 0
    %620 = vmatpush1.bf16.msra.mxu0 0
    %621 = vmatprep.subr.bf16.mxu0 0
    %622 = vmatpush1.bf16.msra.mxu0 0
    %623 = vmatprep.subr.bf16.mxu0 0
    %624 = vmatpush1.bf16.msra.mxu0 0
    %625 = vmatprep.subr.bf16.mxu0 0
    %626 = vmatpush1.bf16.msra.mxu0 0
    %627 = vmatprep.subr.bf16.mxu0 0
    %628 = vmatpush1.bf16.msra.mxu0 0
    %629 = vmatprep.subr.bf16.mxu0 0
    %630 = vmatpush1.bf16.msra.mxu0 0
    %631 = vmatprep.subr.bf16.mxu0 0
    %632 = vmatpush1.bf16.msra.mxu0 0
    %633 = vmatprep.subr.bf16.mxu0 0
    %634 = vmatpush1.bf16.msra.mxu0 0
    %635 = vmatprep.mubr.bf16.mxu0 0
    %636 = vmatmul.mubr.bf16.gmra.mrb[0].mxu0 %v481
    %v637 = vpop.f32.mrb[0].mxu0
    %v638 = vadd.f32 %v598, %v637
    %v639 = vpop.f32.mrb[0].mxu0
    %v640 = vpop.f32.mrb[0].mxu0
    %v641 = vpop.f32.mrb[0].mxu0
    %642 = vdwg.mxu0
    %v643 = vmax.f32 %v638, 0.0
    %v644 = vpack.c.bf16 %v643, %v643
    %v645 = vld [vmem:[%s4] sm:$0xf]
    %v646 = vld [vmem:[%s4 + $0x4] sm:$0xf]
    %v647 = vld [vmem:[%s4 + $0x8] sm:$0xf]
    %v648 = vld [vmem:[%s4 + $0xc] sm:$0xf]
    %v649 = vld [vmem:[%s4 + $0x10] sm:$0xf]
    %v650 = vld [vmem:[%s4 + $0x14] sm:$0xf]
    %v651 = vld [vmem:[%s4 + $0x18] sm:$0xf]
    %v652 = vld [vmem:[%s4 + $0x1c] sm:$0xf]
    %v653 = vld [vmem:[%s4 + $0x20] sm:$0xf]
    %v654 = vld [vmem:[%s4 + $0x24] sm:$0xf]
    %v655 = vld [vmem:[%s4 + $0x28] sm:$0xf]
    %v656 = vld [vmem:[%s4 + $0x2c] sm:$0xf]
    %v657 = vld [vmem:[%s4 + $0x30] sm:$0xf]
    %v658 = vld [vmem:[%s4 + $0x34] sm:$0xf]
    %v659 = vld [vmem:[%s4 + $0x38] sm:$0xf]
    %v660 = vld [vmem:[%s4 + $0x3c] sm:$0xf]
    %v661 = vld [vmem:[%s5] sm:$0x1]
    %v663 = vlaneseq
    %v664 = vshrl.u32 %v663, 7
    %v665 = vsub.s32 0, %v664
    %v666 = vrot.slane %v661, %v665
    %v684 = vunpack.c.l.b16 %v645
    %v685 = vunpack.c.l.b16 %v646
    %v686 = vunpack.c.l.b16 %v647
    %v687 = vunpack.c.l.b16 %v648
    %v688 = vunpack.c.l.b16 %v649
    %v689 = vunpack.c.l.b16 %v650
    %v690 = vunpack.c.l.b16 %v651
    %v691 = vunpack.c.l.b16 %v652
    %v692 = vunpack.c.l.b16 %v653
    %v693 = vunpack.c.l.b16 %v654
    %v694 = vunpack.c.l.b16 %v655
    %v695 = vunpack.c.l.b16 %v656
    %v696 = vunpack.c.l.b16 %v657
    %v697 = vunpack.c.l.b16 %v658
    %v698 = vunpack.c.l.b16 %v659
    %v699 = vunpack.c.l.b16 %v660
    %v700 = vpack.c.b16 %v685, %v684
    %v701 = vpack.c.b16 %v687, %v686
    %v702 = vpack.c.b16 %v689, %v688
    %v703 = vpack.c.b16 %v691, %v690
    %v704 = vpack.c.b16 %v693, %v692
    %v705 = vpack.c.b16 %v695, %v694
    %v706 = vpack.c.b16 %v697, %v696
    %v707 = vpack.c.b16 %v699, %v698
    %716 = vmatprep.subr.bf16.mxu0 0
    %717 = vmatpush1.bf16.msra.mxu0 %v700
    %718 = vmatprep.subr.bf16.mxu0 0
    %719 = vmatpush1.bf16.msra.mxu0 %v701
    %720 = vmatprep.subr.bf16.mxu0 0
    %721 = vmatpush1.bf16.msra.mxu0 %v702
    %722 = vmatprep.subr.bf16.mxu0 0
    %723 = vmatpush1.bf16.msra.mxu0 %v703
    %724 = vmatprep.subr.bf16.mxu0 0
    %725 = vmatpush1.bf16.msra.mxu0 %v704
    %726 = vmatprep.subr.bf16.mxu0 0
    %727 = vmatpush1.bf16.msra.mxu0 %v705
    %728 = vmatprep.subr.bf16.mxu0 0
    %729 = vmatpush1.bf16.msra.mxu0 %v706
    %730 = vmatprep.subr.bf16.mxu0 0
    %731 = vmatpush1.bf16.msra.mxu0 %v707
    %732 = vmatprep.subr.bf16.mxu0 0
    %733 = vmatpush1.bf16.msra.mxu0 0
    %734 = vmatprep.subr.bf16.mxu0 0
    %735 = vmatpush1.bf16.msra.mxu0 0
    %736 = vmatprep.subr.bf16.mxu0 0
    %737 = vmatpush1.bf16.msra.mxu0 0
    %738 = vmatprep.subr.bf16.mxu0 0
    %739 = vmatpush1.bf16.msra.mxu0 0
    %740 = vmatprep.subr.bf16.mxu0 0
    %741 = vmatpush1.bf16.msra.mxu0 0
    %742 = vmatprep.subr.bf16.mxu0 0
    %743 = vmatpush1.bf16.msra.mxu0 0
    %744 = vmatprep.subr.bf16.mxu0 0
    %745 = vmatpush1.bf16.msra.mxu0 0
    %746 = vmatprep.subr.bf16.mxu0 0
    %747 = vmatpush1.bf16.msra.mxu0 0
    %748 = vmatprep.mubr.bf16.mxu0 0
    %749 = vmatmul.mubr.bf16.gmra.mrb[0].mxu0 %v644
    %v750 = vpop.f32.mrb[0].mxu0
    %v751 = vadd.f32 %v666, %v750
    %v752 = vpop.f32.mrb[0].mxu0
    %v753 = vpop.f32.mrb[0].mxu0
    %v754 = vpop.f32.mrb[0].mxu0
    %755 = vdwg.mxu0
    %v756 = vmax.f32 %v751, 0.0
    %v757 = vpack.c.bf16 %v756, %v756
    %v758 = vld [vmem:[%s6] sm:$0xf]
    %v759 = vld [vmem:[%s6 + $0x4] sm:$0xf]
    %v760 = vld [vmem:[%s6 + $0x8] sm:$0xf]
    %v761 = vld [vmem:[%s6 + $0xc] sm:$0xf]
    %v762 = vld [vmem:[%s6 + $0x10] sm:$0xf]
    %v763 = vld [vmem:[%s6 + $0x14] sm:$0xf]
    %v764 = vld [vmem:[%s6 + $0x18] sm:$0xf]
    %v765 = vld [vmem:[%s6 + $0x1c] sm:$0xf]
    %v766 = vld [vmem:[%s7] sm:$0x1]
    %v768 = vlaneseq
    %v769 = vshrl.u32 %v768, 7
    %v770 = vsub.s32 0, %v769
    %v771 = vrot.slane %v766, %v770
    %v781 = vunpack.c.l.b16 %v758
    %v782 = vunpack.c.l.b16 %v759
    %v783 = vunpack.c.l.b16 %v760
    %v784 = vunpack.c.l.b16 %v761
    %v785 = vunpack.c.l.b16 %v762
    %v786 = vunpack.c.l.b16 %v763
    %v787 = vunpack.c.l.b16 %v764
    %v788 = vunpack.c.l.b16 %v765
    %v789 = vpack.c.b16 %v782, %v781
    %v790 = vpack.c.b16 %v784, %v783
    %v791 = vpack.c.b16 %v786, %v785
    %v792 = vpack.c.b16 %v788, %v787
    %vm797 = vcmask 523264
    %v799 = vsel %vm797, %v757, 0
    %801 = vmatprep.subr.bf16.mxu0 0
    %802 = vmatpush1.bf16.msra.mxu0 %v789
    %803 = vmatprep.subr.bf16.mxu0 0
    %804 = vmatpush1.bf16.msra.mxu0 %v790
    %805 = vmatprep.subr.bf16.mxu0 0
    %806 = vmatpush1.bf16.msra.mxu0 %v791
    %807 = vmatprep.subr.bf16.mxu0 0
    %808 = vmatpush1.bf16.msra.mxu0 %v792
    %809 = vmatprep.subr.bf16.mxu0 0
    %810 = vmatpush1.bf16.msra.mxu0 0
    %811 = vmatprep.subr.bf16.mxu0 0
    %812 = vmatpush1.bf16.msra.mxu0 0
    %813 = vmatprep.subr.bf16.mxu0 0
    %814 = vmatpush1.bf16.msra.mxu0 0
    %815 = vmatprep.subr.bf16.mxu0 0
    %816 = vmatpush1.bf16.msra.mxu0 0
    %817 = vmatprep.subr.bf16.mxu0 0
    %818 = vmatpush1.bf16.msra.mxu0 0
    %819 = vmatprep.subr.bf16.mxu0 0
    %820 = vmatpush1.bf16.msra.mxu0 0
    %821 = vmatprep.subr.bf16.mxu0 0
    %822 = vmatpush1.bf16.msra.mxu0 0
    %823 = vmatprep.subr.bf16.mxu0 0
    %824 = vmatpush1.bf16.msra.mxu0 0
    %825 = vmatprep.subr.bf16.mxu0 0
    %826 = vmatpush1.bf16.msra.mxu0 0
    %827 = vmatprep.subr.bf16.mxu0 0
    %828 = vmatpush1.bf16.msra.mxu0 0
    %829 = vmatprep.subr.bf16.mxu0 0
    %830 = vmatpush1.bf16.msra.mxu0 0
    %831 = vmatprep.subr.bf16.mxu0 0
    %832 = vmatpush1.bf16.msra.mxu0 0
    %833 = vmatprep.mubr.bf16.mxu0 0
    %834 = vmatmul.mubr.bf16.gmra.mrb[0].mxu0 %v799
    %v835 = vpop.f32.mrb[0].mxu0
    %v836 = vadd.f32 %v771, %v835
    %v837 = vpop.f32.mrb[0].mxu0
    %v838 = vpop.f32.mrb[0].mxu0
    %v839 = vpop.f32.mrb[0].mxu0
    %840 = vdwg.mxu0
    %v841 = vmul.f32 %v836, 0.5
    %v842 = vmul.f32 %v841, 1.442695
    %v843 = vpow.pop %v842
    %845 = vrot.lane.b32.xlu0 %v843, 64
    %v846 = vpop.permute.xlu0 %845
    %v848 = vmul.f32 %v55, %v846
    %v849 = vadd.f32 %v848, %v836
    %v850 = vpack.c.bf16 %v849, %v849
    %v851 = vld [vmem:[%s8] sm:$0xf]
    %v852 = vld [vmem:[%s8 + $0x4] sm:$0xf]
    %v853 = vld [vmem:[%s8 + $0x8] sm:$0xf]
    %v854 = vld [vmem:[%s8 + $0xc] sm:$0xf]
    %v855 = vld [vmem:[%s8 + $0x10] sm:$0xf]
    %v856 = vld [vmem:[%s8 + $0x14] sm:$0xf]
    %v857 = vld [vmem:[%s8 + $0x18] sm:$0xf]
    %v858 = vld [vmem:[%s8 + $0x1c] sm:$0xf]
    %v859 = vld [vmem:[%s9] sm:$0x1]
    %v861 = vlaneseq
    %v862 = vshrl.u32 %v861, 7
    %v863 = vsub.s32 0, %v862
    %v864 = vrot.slane %v859, %v863
    %v874 = vunpack.c.l.b16 %v851
    %v875 = vunpack.c.l.b16 %v852
    %v876 = vunpack.c.l.b16 %v853
    %v877 = vunpack.c.l.b16 %v854
    %v878 = vunpack.c.l.b16 %v855
    %v879 = vunpack.c.l.b16 %v856
    %v880 = vunpack.c.l.b16 %v857
    %v881 = vunpack.c.l.b16 %v858
    %v882 = vpack.c.b16 %v875, %v874
    %v883 = vpack.c.b16 %v877, %v876
    %v884 = vpack.c.b16 %v879, %v878
    %v885 = vpack.c.b16 %v881, %v880
    %v891 = vsel %vm797, %v850, 0
    %893 = vmatprep.subr.bf16.mxu0 0
    %894 = vmatpush1.bf16.msra.mxu0 %v882
    %895 = vmatprep.subr.bf16.mxu0 0
    %896 = vmatpush1.bf16.msra.mxu0 %v883
    %897 = vmatprep.subr.bf16.mxu0 0
    %898 = vmatpush1.bf16.msra.mxu0 %v884
    %899 = vmatprep.subr.bf16.mxu0 0
    %900 = vmatpush1.bf16.msra.mxu0 %v885
    %901 = vmatprep.subr.bf16.mxu0 0
    %902 = vmatpush1.bf16.msra.mxu0 0
    %903 = vmatprep.subr.bf16.mxu0 0
    %904 = vmatpush1.bf16.msra.mxu0 0
    %905 = vmatprep.subr.bf16.mxu0 0
    %906 = vmatpush1.bf16.msra.mxu0 0
    %907 = vmatprep.subr.bf16.mxu0 0
    %908 = vmatpush1.bf16.msra.mxu0 0
    %909 = vmatprep.subr.bf16.mxu0 0
    %910 = vmatpush1.bf16.msra.mxu0 0
    %911 = vmatprep.subr.bf16.mxu0 0
    %912 = vmatpush1.bf16.msra.mxu0 0
    %913 = vmatprep.subr.bf16.mxu0 0
    %914 = vmatpush1.bf16.msra.mxu0 0
    %915 = vmatprep.subr.bf16.mxu0 0
    %916 = vmatpush1.bf16.msra.mxu0 0
    %917 = vmatprep.subr.bf16.mxu0 0
    %918 = vmatpush1.bf16.msra.mxu0 0
    %919 = vmatprep.subr.bf16.mxu0 0
    %920 = vmatpush1.bf16.msra.mxu0 0
    %921 = vmatprep.subr.bf16.mxu0 0
    %922 = vmatpush1.bf16.msra.mxu0 0
    %923 = vmatprep.subr.bf16.mxu0 0
    %924 = vmatpush1.bf16.msra.mxu0 0
    %925 = vmatprep.mubr.bf16.mxu0 0
    %926 = vmatmul.mubr.bf16.gmra.mrb[0].mxu0 %v891
    %v927 = vpop.f32.mrb[0].mxu0
    %v928 = vadd.f32 %v864, %v927
    %v929 = vpop.f32.mrb[0].mxu0
    %v930 = vpop.f32.mrb[0].mxu0
    %v931 = vpop.f32.mrb[0].mxu0
    %932 = vdwg.mxu0
    %v933 = vmax.f32 %v928, 0.0
    %v934 = vpack.c.bf16 %v933, %v933
    %v935 = vld [vmem:[%s10] sm:$0xf]
    %v936 = vld [vmem:[%s10 + $0x4] sm:$0xf]
    %v937 = vld [vmem:[%s10 + $0x8] sm:$0xf]
    %v938 = vld [vmem:[%s10 + $0xc] sm:$0xf]
    %v939 = vld [vmem:[%s10 + $0x10] sm:$0xf]
    %v940 = vld [vmem:[%s10 + $0x14] sm:$0xf]
    %v941 = vld [vmem:[%s10 + $0x18] sm:$0xf]
    %v942 = vld [vmem:[%s10 + $0x1c] sm:$0xf]
    %v943 = vld [vmem:[%s11] sm:$0x1]
    %v945 = vlaneseq
    %v946 = vshrl.u32 %v945, 7
    %v947 = vsub.s32 0, %v946
    %v948 = vrot.slane %v943, %v947
    %v958 = vunpack.c.l.b16 %v935
    %v959 = vunpack.c.l.b16 %v936
    %v960 = vunpack.c.l.b16 %v937
    %v961 = vunpack.c.l.b16 %v938
    %v962 = vunpack.c.l.b16 %v939
    %v963 = vunpack.c.l.b16 %v940
    %v964 = vunpack.c.l.b16 %v941
    %v965 = vunpack.c.l.b16 %v942
    %v966 = vpack.c.b16 %v959, %v958
    %v967 = vpack.c.b16 %v961, %v960
    %v968 = vpack.c.b16 %v963, %v962
    %v969 = vpack.c.b16 %v965, %v964
    %v975 = vsel %vm797, %v934, 0
    %977 = vmatprep.subr.bf16.mxu0 0
    %978 = vmatpush1.bf16.msra.mxu0 %v966
    %979 = vmatprep.subr.bf16.mxu0 0
    %980 = vmatpush1.bf16.msra.mxu0 %v967
    %981 = vmatprep.subr.bf16.mxu0 0
    %982 = vmatpush1.bf16.msra.mxu0 %v968
    %983 = vmatprep.subr.bf16.mxu0 0
    %984 = vmatpush1.bf16.msra.mxu0 %v969
    %985 = vmatprep.subr.bf16.mxu0 0
    %986 = vmatpush1.bf16.msra.mxu0 0
    %987 = vmatprep.subr.bf16.mxu0 0
    %988 = vmatpush1.bf16.msra.mxu0 0
    %989 = vmatprep.subr.bf16.mxu0 0
    %990 = vmatpush1.bf16.msra.mxu0 0
    %991 = vmatprep.subr.bf16.mxu0 0
    %992 = vmatpush1.bf16.msra.mxu0 0
    %993 = vmatprep.subr.bf16.mxu0 0
    %994 = vmatpush1.bf16.msra.mxu0 0
    %995 = vmatprep.subr.bf16.mxu0 0
    %996 = vmatpush1.bf16.msra.mxu0 0
    %997 = vmatprep.subr.bf16.mxu0 0
    %998 = vmatpush1.bf16.msra.mxu0 0
    %999 = vmatprep.subr.bf16.mxu0 0
    %1000 = vmatpush1.bf16.msra.mxu0 0
    %1001 = vmatprep.subr.bf16.mxu0 0
    %1002 = vmatpush1.bf16.msra.mxu0 0
    %1003 = vmatprep.subr.bf16.mxu0 0
    %1004 = vmatpush1.bf16.msra.mxu0 0
    %1005 = vmatprep.subr.bf16.mxu0 0
    %1006 = vmatpush1.bf16.msra.mxu0 0
    %1007 = vmatprep.subr.bf16.mxu0 0
    %1008 = vmatpush1.bf16.msra.mxu0 0
    %1009 = vmatprep.mubr.bf16.mxu0 0
    %1010 = vmatmul.mubr.bf16.gmra.mrb[0].mxu0 %v975
    %v1011 = vpop.f32.mrb[0].mxu0
    %v1012 = vadd.f32 %v948, %v1011
    %v1013 = vpop.f32.mrb[0].mxu0
    %v1014 = vpop.f32.mrb[0].mxu0
    %v1015 = vpop.f32.mrb[0].mxu0
    %1016 = vdwg.mxu0
    %v1017 = vmax.f32 %v1012, 0.0
    %v1018 = vpack.c.bf16 %v1017, %v1017
    %v1019 = vld [vmem:[%s12] sm:$0xff]
    %v1020 = vld [vmem:[%s12 + $0x8] sm:$0xff]
    %v1021 = vld [vmem:[%s12 + $0x10] sm:$0xff]
    %v1022 = vld [vmem:[%s12 + $0x18] sm:$0xf]
    %v1023 = vld [vmem:[%s12 + $0x1c] sm:$0xff]
    %v1024 = vld [vmem:[%s12 + $0x24] sm:$0xff]
    %v1025 = vld [vmem:[%s12 + $0x2c] sm:$0xff]
    %v1026 = vld [vmem:[%s12 + $0x34] sm:$0xf]
    %v1027 = vld [vmem:[%s12 + $0x38] sm:$0xff]
    %v1028 = vld [vmem:[%s12 + $0x40] sm:$0xff]
    %v1029 = vld [vmem:[%s12 + $0x48] sm:$0xff]
    %v1030 = vld [vmem:[%s12 + $0x50] sm:$0xf]
    %v1031 = vld [vmem:[%s12 + $0x54] sm:$0xff]
    %v1032 = vld [vmem:[%s12 + $0x5c] sm:$0xff]
    %v1033 = vld [vmem:[%s12 + $0x64] sm:$0xff]
    %v1034 = vld [vmem:[%s12 + $0x6c] sm:$0xf]
    %v1035 = vld [vmem:[%s12 + $0x70] sm:$0xff]
    %v1036 = vld [vmem:[%s12 + $0x78] sm:$0xff]
    %v1037 = vld [vmem:[%s12 + $0x80] sm:$0xff]
    %v1038 = vld [vmem:[%s12 + $0x88] sm:$0xf]
    %v1039 = vld [vmem:[%s12 + $0x8c] sm:$0xff]
    %v1040 = vld [vmem:[%s12 + $0x94] sm:$0xff]
    %v1041 = vld [vmem:[%s12 + $0x9c] sm:$0xff]
    %v1042 = vld [vmem:[%s12 + $0xa4] sm:$0xf]
    %v1043 = vld [vmem:[%s12 + $0xa8] sm:$0xff]
    %v1044 = vld [vmem:[%s12 + $0xb0] sm:$0xff]
    %v1045 = vld [vmem:[%s12 + $0xb8] sm:$0xff]
    %v1046 = vld [vmem:[%s12 + $0xc0] sm:$0xf]
    %v1047 = vld [vmem:[%s12 + $0xc4] sm:$0xff]
    %v1048 = vld [vmem:[%s12 + $0xcc] sm:$0xff]
    %v1049 = vld [vmem:[%s12 + $0xd4] sm:$0xff]
    %v1050 = vld [vmem:[%s12 + $0xdc] sm:$0xf]
    %v1051 = vld [vmem:[%s12 + $0xe0] sm:$0xff]
    %v1052 = vld [vmem:[%s12 + $0xe8] sm:$0xff]
    %v1053 = vld [vmem:[%s12 + $0xf0] sm:$0xff]
    %v1054 = vld [vmem:[%s12 + $0xf8] sm:$0xf]
    %v1055 = vld [vmem:[%s12 + $0xfc] sm:$0xff]
    %v1056 = vld [vmem:[%s12 + $0x104] sm:$0xff]
    %v1057 = vld [vmem:[%s12 + $0x10c] sm:$0xff]
    %v1058 = vld [vmem:[%s12 + $0x114] sm:$0xf]
    %v1059 = vld [vmem:[%s12 + $0x118] sm:$0xff]
    %v1060 = vld [vmem:[%s12 + $0x120] sm:$0xff]
    %v1061 = vld [vmem:[%s12 + $0x128] sm:$0xff]
    %v1062 = vld [vmem:[%s12 + $0x130] sm:$0xf]
    %v1063 = vld [vmem:[%s12 + $0x134] sm:$0xff]
    %v1064 = vld [vmem:[%s12 + $0x13c] sm:$0xff]
    %v1065 = vld [vmem:[%s12 + $0x144] sm:$0xff]
    %v1066 = vld [vmem:[%s12 + $0x14c] sm:$0xf]
    %v1067 = vld [vmem:[%s12 + $0x150] sm:$0xff]
    %v1068 = vld [vmem:[%s12 + $0x158] sm:$0xff]
    %v1069 = vld [vmem:[%s12 + $0x160] sm:$0xff]
    %v1070 = vld [vmem:[%s12 + $0x168] sm:$0xf]
    %v1071 = vld [vmem:[%s12 + $0x16c] sm:$0xff]
    %v1072 = vld [vmem:[%s12 + $0x174] sm:$0xff]
    %v1073 = vld [vmem:[%s12 + $0x17c] sm:$0xff]
    %v1074 = vld [vmem:[%s12 + $0x184] sm:$0xf]
    %v1075 = vld [vmem:[%s12 + $0x188] sm:$0xff]
    %v1076 = vld [vmem:[%s12 + $0x190] sm:$0xff]
    %v1077 = vld [vmem:[%s12 + $0x198] sm:$0xff]
    %v1078 = vld [vmem:[%s12 + $0x1a0] sm:$0xf]
    %v1079 = vld [vmem:[%s12 + $0x1a4] sm:$0xff]
    %v1080 = vld [vmem:[%s12 + $0x1ac] sm:$0xff]
    %v1081 = vld [vmem:[%s12 + $0x1b4] sm:$0xff]
    %v1082 = vld [vmem:[%s12 + $0x1bc] sm:$0xf]
    %v1083 = vld [vmem:[%s13] sm:$0x7f]
    %v1085 = vlaneseq
    %v1086 = vshrl.u32 %v1085, 7
    %v1087 = vsub.s32 0, %v1086
    %v1088 = vrot.slane %v1083, %v1087
    %v1089 = vlaneseq
    %v1090 = vshrl.u32 %v1089, 7
    %v1091 = vsub.s32 1, %v1090
    %v1092 = vrot.slane %v1083, %v1091
    %v1093 = vlaneseq
    %v1094 = vshrl.u32 %v1093, 7
    %v1095 = vsub.s32 2, %v1094
    %v1096 = vrot.slane %v1083, %v1095
    %v1097 = vlaneseq
    %v1098 = vshrl.u32 %v1097, 7
    %v1099 = vsub.s32 3, %v1098
    %v1100 = vrot.slane %v1083, %v1099
    %v1101 = vlaneseq
    %v1102 = vshrl.u32 %v1101, 7
    %v1103 = vsub.s32 4, %v1102
    %v1104 = vrot.slane %v1083, %v1103
    %v1105 = vlaneseq
    %v1106 = vshrl.u32 %v1105, 7
    %v1107 = vsub.s32 5, %v1106
    %v1108 = vrot.slane %v1083, %v1107
    %v1109 = vlaneseq
    %v1110 = vshrl.u32 %v1109, 7
    %v1111 = vsub.s32 6, %v1110
    %v1112 = vrot.slane %v1083, %v1111
    %v1184 = vunpack.c.l.b16 %v1019
    %v1185 = vunpack.c.h.b16 %v1019
    %v1186 = vunpack.c.l.b16 %v1020
    %v1187 = vunpack.c.h.b16 %v1020
    %v1188 = vunpack.c.l.b16 %v1021
    %v1189 = vunpack.c.h.b16 %v1021
    %v1190 = vunpack.c.l.b16 %v1022
    %v1191 = vunpack.c.l.b16 %v1023
    %v1192 = vunpack.c.h.b16 %v1023
    %v1193 = vunpack.c.l.b16 %v1024
    %v1194 = vunpack.c.h.b16 %v1024
    %v1195 = vunpack.c.l.b16 %v1025
    %v1196 = vunpack.c.h.b16 %v1025
    %v1197 = vunpack.c.l.b16 %v1026
    %v1198 = vunpack.c.l.b16 %v1027
    %v1199 = vunpack.c.h.b16 %v1027
    %v1200 = vunpack.c.l.b16 %v1028
    %v1201 = vunpack.c.h.b16 %v1028
    %v1202 = vunpack.c.l.b16 %v1029
    %v1203 = vunpack.c.h.b16 %v1029
    %v1204 = vunpack.c.l.b16 %v1030
    %v1205 = vunpack.c.l.b16 %v1031
    %v1206 = vunpack.c.h.b16 %v1031
    %v1207 = vunpack.c.l.b16 %v1032
    %v1208 = vunpack.c.h.b16 %v1032
    %v1209 = vunpack.c.l.b16 %v1033
    %v1210 = vunpack.c.h.b16 %v1033
    %v1211 = vunpack.c.l.b16 %v1034
    %v1212 = vunpack.c.l.b16 %v1035
    %v1213 = vunpack.c.h.b16 %v1035
    %v1214 = vunpack.c.l.b16 %v1036
    %v1215 = vunpack.c.h.b16 %v1036
    %v1216 = vunpack.c.l.b16 %v1037
    %v1217 = vunpack.c.h.b16 %v1037
    %v1218 = vunpack.c.l.b16 %v1038
    %v1219 = vunpack.c.l.b16 %v1039
    %v1220 = vunpack.c.h.b16 %v1039
    %v1221 = vunpack.c.l.b16 %v1040
    %v1222 = vunpack.c.h.b16 %v1040
    %v1223 = vunpack.c.l.b16 %v1041
    %v1224 = vunpack.c.h.b16 %v1041
    %v1225 = vunpack.c.l.b16 %v1042
    %v1226 = vunpack.c.l.b16 %v1043
    %v1227 = vunpack.c.h.b16 %v1043
    %v1228 = vunpack.c.l.b16 %v1044
    %v1229 = vunpack.c.h.b16 %v1044
    %v1230 = vunpack.c.l.b16 %v1045
    %v1231 = vunpack.c.h.b16 %v1045
    %v1232 = vunpack.c.l.b16 %v1046
    %v1233 = vunpack.c.l.b16 %v1047
    %v1234 = vunpack.c.h.b16 %v1047
    %v1235 = vunpack.c.l.b16 %v1048
    %v1236 = vunpack.c.h.b16 %v1048
    %v1237 = vunpack.c.l.b16 %v1049
    %v1238 = vunpack.c.h.b16 %v1049
    %v1239 = vunpack.c.l.b16 %v1050
    %v1240 = vunpack.c.l.b16 %v1051
    %v1241 = vunpack.c.h.b16 %v1051
    %v1242 = vunpack.c.l.b16 %v1052
    %v1243 = vunpack.c.h.b16 %v1052
    %v1244 = vunpack.c.l.b16 %v1053
    %v1245 = vunpack.c.h.b16 %v1053
    %v1246 = vunpack.c.l.b16 %v1054
    %v1247 = vunpack.c.l.b16 %v1055
    %v1248 = vunpack.c.h.b16 %v1055
    %v1249 = vunpack.c.l.b16 %v1056
    %v1250 = vunpack.c.h.b16 %v1056
    %v1251 = vunpack.c.l.b16 %v1057
    %v1252 = vunpack.c.h.b16 %v1057
    %v1253 = vunpack.c.l.b16 %v1058
    %v1254 = vunpack.c.l.b16 %v1059
    %v1255 = vunpack.c.h.b16 %v1059
    %v1256 = vunpack.c.l.b16 %v1060
    %v1257 = vunpack.c.h.b16 %v1060
    %v1258 = vunpack.c.l.b16 %v1061
    %v1259 = vunpack.c.h.b16 %v1061
    %v1260 = vunpack.c.l.b16 %v1062
    %v1261 = vunpack.c.l.b16 %v1063
    %v1262 = vunpack.c.h.b16 %v1063
    %v1263 = vunpack.c.l.b16 %v1064
    %v1264 = vunpack.c.h.b16 %v1064
    %v1265 = vunpack.c.l.b16 %v1065
    %v1266 = vunpack.c.h.b16 %v1065
    %v1267 = vunpack.c.l.b16 %v1066
    %v1268 = vunpack.c.l.b16 %v1067
    %v1269 = vunpack.c.h.b16 %v1067
    %v1270 = vunpack.c.l.b16 %v1068
    %v1271 = vunpack.c.h.b16 %v1068
    %v1272 = vunpack.c.l.b16 %v1069
    %v1273 = vunpack.c.h.b16 %v1069
    %v1274 = vunpack.c.l.b16 %v1070
    %v1275 = vunpack.c.l.b16 %v1071
    %v1276 = vunpack.c.h.b16 %v1071
    %v1277 = vunpack.c.l.b16 %v1072
    %v1278 = vunpack.c.h.b16 %v1072
    %v1279 = vunpack.c.l.b16 %v1073
    %v1280 = vunpack.c.h.b16 %v1073
    %v1281 = vunpack.c.l.b16 %v1074
    %v1282 = vunpack.c.l.b16 %v1075
    %v1283 = vunpack.c.h.b16 %v1075
    %v1284 = vunpack.c.l.b16 %v1076
    %v1285 = vunpack.c.h.b16 %v1076
    %v1286 = vunpack.c.l.b16 %v1077
    %v1287 = vunpack.c.h.b16 %v1077
    %v1288 = vunpack.c.l.b16 %v1078
    %v1289 = vunpack.c.l.b16 %v1079
    %v1290 = vunpack.c.h.b16 %v1079
    %v1291 = vunpack.c.l.b16 %v1080
    %v1292 = vunpack.c.h.b16 %v1080
    %v1293 = vunpack.c.l.b16 %v1081
    %v1294 = vunpack.c.h.b16 %v1081
    %v1295 = vunpack.c.l.b16 %v1082
    %v1296 = vpack.c.b16 %v1191, %v1184
    %v1297 = vpack.c.b16 %v1192, %v1185
    %v1298 = vpack.c.b16 %v1193, %v1186
    %v1299 = vpack.c.b16 %v1194, %v1187
    %v1300 = vpack.c.b16 %v1195, %v1188
    %v1301 = vpack.c.b16 %v1196, %v1189
    %v1302 = vpack.c.b16 %v1197, %v1190
    %v1303 = vpack.c.b16 %v1205, %v1198
    %v1304 = vpack.c.b16 %v1206, %v1199
    %v1305 = vpack.c.b16 %v1207, %v1200
    %v1306 = vpack.c.b16 %v1208, %v1201
    %v1307 = vpack.c.b16 %v1209, %v1202
    %v1308 = vpack.c.b16 %v1210, %v1203
    %v1309 = vpack.c.b16 %v1211, %v1204
    %v1310 = vpack.c.b16 %v1219, %v1212
    %v1311 = vpack.c.b16 %v1220, %v1213
    %v1312 = vpack.c.b16 %v1221, %v1214
    %v1313 = vpack.c.b16 %v1222, %v1215
    %v1314 = vpack.c.b16 %v1223, %v1216
    %v1315 = vpack.c.b16 %v1224, %v1217
    %v1316 = vpack.c.b16 %v1225, %v1218
    %v1317 = vpack.c.b16 %v1233, %v1226
    %v1318 = vpack.c.b16 %v1234, %v1227
    %v1319 = vpack.c.b16 %v1235, %v1228
    %v1320 = vpack.c.b16 %v1236, %v1229
    %v1321 = vpack.c.b16 %v1237, %v1230
    %v1322 = vpack.c.b16 %v1238, %v1231
    %v1323 = vpack.c.b16 %v1239, %v1232
    %v1324 = vpack.c.b16 %v1247, %v1240
    %v1325 = vpack.c.b16 %v1248, %v1241
    %v1326 = vpack.c.b16 %v1249, %v1242
    %v1327 = vpack.c.b16 %v1250, %v1243
    %v1328 = vpack.c.b16 %v1251, %v1244
    %v1329 = vpack.c.b16 %v1252, %v1245
    %v1330 = vpack.c.b16 %v1253, %v1246
    %v1331 = vpack.c.b16 %v1261, %v1254
    %v1332 = vpack.c.b16 %v1262, %v1255
    %v1333 = vpack.c.b16 %v1263, %v1256
    %v1334 = vpack.c.b16 %v1264, %v1257
    %v1335 = vpack.c.b16 %v1265, %v1258
    %v1336 = vpack.c.b16 %v1266, %v1259
    %v1337 = vpack.c.b16 %v1267, %v1260
    %v1338 = vpack.c.b16 %v1275, %v1268
    %v1339 = vpack.c.b16 %v1276, %v1269
    %v1340 = vpack.c.b16 %v1277, %v1270
    %v1341 = vpack.c.b16 %v1278, %v1271
    %v1342 = vpack.c.b16 %v1279, %v1272
    %v1343 = vpack.c.b16 %v1280, %v1273
    %v1344 = vpack.c.b16 %v1281, %v1274
    %v1345 = vpack.c.b16 %v1289, %v1282
    %v1346 = vpack.c.b16 %v1290, %v1283
    %v1347 = vpack.c.b16 %v1291, %v1284
    %v1348 = vpack.c.b16 %v1292, %v1285
    %v1349 = vpack.c.b16 %v1293, %v1286
    %v1350 = vpack.c.b16 %v1294, %v1287
    %v1351 = vpack.c.b16 %v1295, %v1288
    %1408 = vmatprep.subr.bf16.mxu0 %v1297
    %1409 = vmatpush1.bf16.msra.mxu0 %v1296
    %1410 = vmatprep.subr.bf16.mxu0 %v1304
    %1411 = vmatpush1.bf16.msra.mxu0 %v1303
    %1412 = vmatprep.subr.bf16.mxu0 %v1311
    %1413 = vmatpush1.bf16.msra.mxu0 %v1310
    %1414 = vmatprep.subr.bf16.mxu0 %v1318
    %1415 = vmatpush1.bf16.msra.mxu0 %v1317
    %1416 = vmatprep.subr.bf16.mxu0 %v1325
    %1417 = vmatpush1.bf16.msra.mxu0 %v1324
    %1418 = vmatprep.subr.bf16.mxu0 %v1332
    %1419 = vmatpush1.bf16.msra.mxu0 %v1331
    %1420 = vmatprep.subr.bf16.mxu0 %v1339
    %1421 = vmatpush1.bf16.msra.mxu0 %v1338
    %1422 = vmatprep.subr.bf16.mxu0 %v1346
    %1423 = vmatpush1.bf16.msra.mxu0 %v1345
    %1424 = vmatprep.subr.bf16.mxu0 0
    %1425 = vmatpush1.bf16.msra.mxu0 0
    %1426 = vmatprep.subr.bf16.mxu0 0
    %1427 = vmatpush1.bf16.msra.mxu0 0
    %1428 = vmatprep.subr.bf16.mxu0 0
    %1429 = vmatpush1.bf16.msra.mxu0 0
    %1430 = vmatprep.subr.bf16.mxu0 0
    %1431 = vmatpush1.bf16.msra.mxu0 0
    %1432 = vmatprep.subr.bf16.mxu0 0
    %1433 = vmatpush1.bf16.msra.mxu0 0
    %1434 = vmatprep.subr.bf16.mxu0 0
    %1435 = vmatpush1.bf16.msra.mxu0 0
    %1436 = vmatprep.subr.bf16.mxu0 0
    %1437 = vmatpush1.bf16.msra.mxu0 0
    %1438 = vmatprep.subr.bf16.mxu0 0
    %1439 = vmatpush1.bf16.msra.mxu0 0
    %1440 = vmatprep.mubr.bf16.mxu0 0
    %1441 = vmatmul.mubr.bf16.gmra.mrb[0].mxu0 %v1018
    %v1442 = vpop.f32.mrb[0].mxu0
    %v1443 = vadd.f32 %v1088, %v1442
    %v1444 = vpop.f32.mrb[0].mxu0
    %v1445 = vadd.f32 %v1092, %v1444
    %v1446 = vpop.f32.mrb[0].mxu0
    %v1447 = vpop.f32.mrb[0].mxu0
    %1448 = vdwg.mxu0
    %1449 = vmatprep.subr.bf16.mxu0 %v1299
    %1450 = vmatpush1.bf16.msra.mxu0 %v1298
    %1451 = vmatprep.subr.bf16.mxu0 %v1306
    %1452 = vmatpush1.bf16.msra.mxu0 %v1305
    %1453 = vmatprep.subr.bf16.mxu0 %v1313
    %1454 = vmatpush1.bf16.msra.mxu0 %v1312
    %1455 = vmatprep.subr.bf16.mxu0 %v1320
    %1456 = vmatpush1.bf16.msra.mxu0 %v1319
    %1457 = vmatprep.subr.bf16.mxu0 %v1327
    %1458 = vmatpush1.bf16.msra.mxu0 %v1326
    %1459 = vmatprep.subr.bf16.mxu0 %v1334
    %1460 = vmatpush1.bf16.msra.mxu0 %v1333
    %1461 = vmatprep.subr.bf16.mxu0 %v1341
    %1462 = vmatpush1.bf16.msra.mxu0 %v1340
    %1463 = vmatprep.subr.bf16.mxu0 %v1348
    %1464 = vmatpush1.bf16.msra.mxu0 %v1347
    %1465 = vmatprep.subr.bf16.mxu0 0
    %1466 = vmatpush1.bf16.msra.mxu0 0
    %1467 = vmatprep.subr.bf16.mxu0 0
    %1468 = vmatpush1.bf16.msra.mxu0 0
    %1469 = vmatprep.subr.bf16.mxu0 0
    %1470 = vmatpush1.bf16.msra.mxu0 0
    %1471 = vmatprep.subr.bf16.mxu0 0
    %1472 = vmatpush1.bf16.msra.mxu0 0
    %1473 = vmatprep.subr.bf16.mxu0 0
    %1474 = vmatpush1.bf16.msra.mxu0 0
    %1475 = vmatprep.subr.bf16.mxu0 0
    %1476 = vmatpush1.bf16.msra.mxu0 0
    %1477 = vmatprep.subr.bf16.mxu0 0
    %1478 = vmatpush1.bf16.msra.mxu0 0
    %1479 = vmatprep.subr.bf16.mxu0 0
    %1480 = vmatpush1.bf16.msra.mxu0 0
    %1481 = vmatprep.mubr.bf16.mxu0 0
    %1482 = vmatmul.mubr.bf16.gmra.mrb[0].mxu0 %v1018
    %v1483 = vpop.f32.mrb[0].mxu0
    %v1484 = vadd.f32 %v1096, %v1483
    %v1485 = vpop.f32.mrb[0].mxu0
    %v1486 = vadd.f32 %v1100, %v1485
    %v1487 = vpop.f32.mrb[0].mxu0
    %v1488 = vpop.f32.mrb[0].mxu0
    %1489 = vdwg.mxu0
    %1490 = vmatprep.subr.bf16.mxu0 %v1301
    %1491 = vmatpush1.bf16.msra.mxu0 %v1300
    %1492 = vmatprep.subr.bf16.mxu0 %v1308
    %1493 = vmatpush1.bf16.msra.mxu0 %v1307
    %1494 = vmatprep.subr.bf16.mxu0 %v1315
    %1495 = vmatpush1.bf16.msra.mxu0 %v1314
    %1496 = vmatprep.subr.bf16.mxu0 %v1322
    %1497 = vmatpush1.bf16.msra.mxu0 %v1321
    %1498 = vmatprep.subr.bf16.mxu0 %v1329
    %1499 = vmatpush1.bf16.msra.mxu0 %v1328
    %1500 = vmatprep.subr.bf16.mxu0 %v1336
    %1501 = vmatpush1.bf16.msra.mxu0 %v1335
    %1502 = vmatprep.subr.bf16.mxu0 %v1343
    %1503 = vmatpush1.bf16.msra.mxu0 %v1342
    %1504 = vmatprep.subr.bf16.mxu0 %v1350
    %1505 = vmatpush1.bf16.msra.mxu0 %v1349
    %1506 = vmatprep.subr.bf16.mxu0 0
    %1507 = vmatpush1.bf16.msra.mxu0 0
    %1508 = vmatprep.subr.bf16.mxu0 0
    %1509 = vmatpush1.bf16.msra.mxu0 0
    %1510 = vmatprep.subr.bf16.mxu0 0
    %1511 = vmatpush1.bf16.msra.mxu0 0
    %1512 = vmatprep.subr.bf16.mxu0 0
    %1513 = vmatpush1.bf16.msra.mxu0 0
    %1514 = vmatprep.subr.bf16.mxu0 0
    %1515 = vmatpush1.bf16.msra.mxu0 0
    %1516 = vmatprep.subr.bf16.mxu0 0
    %1517 = vmatpush1.bf16.msra.mxu0 0
    %1518 = vmatprep.subr.bf16.mxu0 0
    %1519 = vmatpush1.bf16.msra.mxu0 0
    %1520 = vmatprep.subr.bf16.mxu0 0
    %1521 = vmatpush1.bf16.msra.mxu0 0
    %1522 = vmatprep.mubr.bf16.mxu0 0
    %1523 = vmatmul.mubr.bf16.gmra.mrb[0].mxu0 %v1018
    %v1524 = vpop.f32.mrb[0].mxu0
    %v1525 = vadd.f32 %v1104, %v1524
    %v1526 = vpop.f32.mrb[0].mxu0
    %v1527 = vadd.f32 %v1108, %v1526
    %v1528 = vpop.f32.mrb[0].mxu0
    %v1529 = vpop.f32.mrb[0].mxu0
    %1530 = vdwg.mxu0
    %1531 = vmatprep.subr.bf16.mxu0 0
    %1532 = vmatpush1.bf16.msra.mxu0 %v1302
    %1533 = vmatprep.subr.bf16.mxu0 0
    %1534 = vmatpush1.bf16.msra.mxu0 %v1309
    %1535 = vmatprep.subr.bf16.mxu0 0
    %1536 = vmatpush1.bf16.msra.mxu0 %v1316
    %1537 = vmatprep.subr.bf16.mxu0 0
    %1538 = vmatpush1.bf16.msra.mxu0 %v1323
    %1539 = vmatprep.subr.bf16.mxu0 0
    %1540 = vmatpush1.bf16.msra.mxu0 %v1330
    %1541 = vmatprep.subr.bf16.mxu0 0
    %1542 = vmatpush1.bf16.msra.mxu0 %v1337
    %1543 = vmatprep.subr.bf16.mxu0 0
    %1544 = vmatpush1.bf16.msra.mxu0 %v1344
    %1545 = vmatprep.subr.bf16.mxu0 0
    %1546 = vmatpush1.bf16.msra.mxu0 %v1351
    %1547 = vmatprep.subr.bf16.mxu0 0
    %1548 = vmatpush1.bf16.msra.mxu0 0
    %1549 = vmatprep.subr.bf16.mxu0 0
    %1550 = vmatpush1.bf16.msra.mxu0 0
    %1551 = vmatprep.subr.bf16.mxu0 0
    %1552 = vmatpush1.bf16.msra.mxu0 0
    %1553 = vmatprep.subr.bf16.mxu0 0
    %1554 = vmatpush1.bf16.msra.mxu0 0
    %1555 = vmatprep.subr.bf16.mxu0 0
    %1556 = vmatpush1.bf16.msra.mxu0 0
    %1557 = vmatprep.subr.bf16.mxu0 0
    %1558 = vmatpush1.bf16.msra.mxu0 0
    %1559 = vmatprep.subr.bf16.mxu0 0
    %1560 = vmatpush1.bf16.msra.mxu0 0
    %1561 = vmatprep.subr.bf16.mxu0 0
    %1562 = vmatpush1.bf16.msra.mxu0 0
    %1563 = vmatprep.mubr.bf16.mxu0 0
    %1564 = vmatmul.mubr.bf16.gmra.mrb[0].mxu0 %v1018
    %v1565 = vpop.f32.mrb[0].mxu0
    %v1566 = vadd.f32 %v1112, %v1565
    %v1567 = vpop.f32.mrb[0].mxu0
    %v1568 = vpop.f32.mrb[0].mxu0
    %v1569 = vpop.f32.mrb[0].mxu0
    %1570 = vdwg.mxu0
    %v1571 = vxor.u32 %v1443, 2147483648
    %v1572 = vxor.u32 %v1445, 2147483648
    %v1573 = vxor.u32 %v1484, 2147483648
    %v1574 = vxor.u32 %v1486, 2147483648
    %v1575 = vxor.u32 %v1525, 2147483648
    %v1576 = vxor.u32 %v1527, 2147483648
    %v1577 = vxor.u32 %v1566, 2147483648
    %v1578 = vmul.f32 %v1571, 1.442695
    %v1579 = vpow.pop %v1578
    %v1580 = vmul.f32 %v1572, 1.442695
    %v1581 = vpow.pop %v1580
    %v1582 = vmul.f32 %v1573, 1.442695
    %v1583 = vpow.pop %v1582
    %v1584 = vmul.f32 %v1574, 1.442695
    %v1585 = vpow.pop %v1584
    %v1586 = vmul.f32 %v1575, 1.442695
    %v1587 = vpow.pop %v1586
    %v1588 = vmul.f32 %v1576, 1.442695
    %v1589 = vpow.pop %v1588
    %v1590 = vmul.f32 %v1577, 1.442695
    %v1591 = vpow.pop %v1590
    %v1592 = vadd.f32 %v1579, 1.0
    %v1593 = vadd.f32 %v1581, 1.0
    %v1594 = vadd.f32 %v1583, 1.0
    %v1595 = vadd.f32 %v1585, 1.0
    %v1596 = vadd.f32 %v1587, 1.0
    %v1597 = vadd.f32 %v1589, 1.0
    %v1598 = vadd.f32 %v1591, 1.0
    %v1599 = vrcp.pop %v1592
    %v1600 = vmul.f32 1.0, %v1599
    %v1601 = vrcp.pop %v1593
    %v1602 = vmul.f32 1.0, %v1601
    %v1603 = vrcp.pop %v1594
    %v1604 = vmul.f32 1.0, %v1603
    %v1605 = vrcp.pop %v1595
    %v1606 = vmul.f32 1.0, %v1605
    %v1607 = vrcp.pop %v1596
    %v1608 = vmul.f32 1.0, %v1607
    %v1609 = vrcp.pop %v1597
    %v1610 = vmul.f32 1.0, %v1609
    %v1611 = vrcp.pop %v1598
    %v1612 = vmul.f32 1.0, %v1611
    %v1613 = vpack.c.bf16 %v1600, %v1600
    %v1614 = vpack.c.bf16 %v1602, %v1602
    %v1615 = vpack.c.bf16 %v1604, %v1604
    %v1616 = vpack.c.bf16 %v1606, %v1606
    %v1617 = vpack.c.bf16 %v1608, %v1608
    %v1618 = vpack.c.bf16 %v1610, %v1610
    %v1619 = vpack.c.bf16 %v1612, %v1612
    %v1627 = vunpack.c.l.b16 %v1613
    %v1628 = vunpack.c.l.b16 %v1614
    %v1629 = vunpack.c.l.b16 %v1615
    %v1630 = vunpack.c.l.b16 %v1616
    %v1631 = vunpack.c.l.b16 %v1617
    %v1632 = vunpack.c.l.b16 %v1618
    %v1633 = vunpack.c.l.b16 %v1619
    %v1634 = vpack.c.b16 %v1628, %v1627
    %v1635 = vpack.c.b16 %v1630, %v1629
    %v1636 = vpack.c.b16 %v1632, %v1631
    %v1637 = vpack.c.b16 %v1633, %v1633
    %1642 = vst [vmem:[#allocation2] sm:$0xff] %v1634
    %1643 = vst [vmem:[#allocation2 + $0x8] sm:$0xff] %v1635
    %1644 = vst [vmem:[#allocation2 + $0x10] sm:$0xff] %v1636
    %vm1645 = vcmask 125952
    %1646 = vst.msk [vmem:[#allocation2 + $0x18] sm:$0xf] %vm1645, %v1637
    %1647 = vst [vmem:[%s15] sm:$0xff] %v836
    // Predicated region
    $region58: #{vae_forward.1} parent=1 // pred_check
      _
    $region59: #{vae_forward.1} parent=1 // pred_check_branch
      %1649 = sbr.rel (0) target = $region61
    $region60: #{vae_forward.1} parent=1 // pred_region
      %s1651 = ssub.s32 448, 448
      %1652 = vsyncadd [#allocation3], %s1651
      %s1654 = sshll.u32 [#allocation2], 4
      %s1655 = int_to_ptr.vmem [resolvable:$true] %s1654
      %1657 = dma.vmem_to_hbm [thread:$0]  %s1655, 448, %s14, [#allocation3]
    $region61: #{vae_forward.1} parent=1 // pred_fallthru
      _
    // Predicated region
    $region62: #{vae_forward.1} parent=1 // pred_check
      _
    $region63: #{vae_forward.1} parent=1 // pred_check_branch
      %1659 = sbr.rel (0) target = $region65
    $region64: #{vae_forward.1} parent=1 // pred_region
      _
    $region65: #{vae_forward.1} parent=1 // pred_fallthru
      _
    // Predicated region
    $region66: #{vae_forward.1} parent=1 // pred_check
      _
    $region67: #{vae_forward.1} parent=1 // pred_check_branch
      %1661 = sbr.rel (0) target = $region69
    $region68: #{vae_forward.1} parent=1 // pred_region
      %1662 = dma.done [#allocation3], 448
    $region69: #{vae_forward.1} parent=1 // pred_fallthru
      _
    // Predicated region
    $region70: #{vae_forward.1} parent=1 // pred_check
      _
    $region71: #{vae_forward.1} parent=1 // pred_check_branch
      %1664 = sbr.rel (0) target = $region73
    $region72: #{vae_forward.1} parent=1 // pred_region
      _
    $region73: #{vae_forward.1} parent=1 // pred_fallthru
      _
    %1665 = vsyncpa [#allocation3], 1

</llo_original>
